<compile_context>
chip_gen: v7x
topology: tpu7x:2x2x1
jax: 0.10.0
libtpu: 0.0.40
codegen_flags: <defaults>
</compile_context>

<pallas_src>
import functools

import jax
import jax.numpy as jnp
from jax.experimental import pallas as pl
from jax.experimental.pallas import tpu as pltpu

LN_EPS = 1e-5


# -----------------------------------------------------------------------------
# Fused Pallas kernel (one program = one batch element)
# -----------------------------------------------------------------------------
def _layernorm(x, g, b):
    mu = jnp.mean(x, axis=-1, keepdims=True)
    var = jnp.mean(jnp.square(x - mu), axis=-1, keepdims=True)
    return (x - mu) * jax.lax.rsqrt(var + LN_EPS) * g + b


def _vit_decoder_kernel(x_ref, pe_ref, ln_ref, wqkv_ref, wo_ref, w1_ref, w2_ref,
                        b1_ref, b2_ref, head_w_ref, head_b_ref, o_ref,
                        *, depth, heads, dim_head):
    """Fused: pos-emb add + `depth` transformer blocks + final LN + head Linear + Tanh.

    x_ref: (1, S, D) block of the (B, S, D) input for this grid step (one batch element).
    ln_ref: (2*depth+1, 2, D)  -- [attn LN_l, ff LN_l]*depth + final LN, each (gamma, beta).
    wqkv_ref: (depth, D, 3*heads*dh) bf16 with feature order [q heads | k heads | v heads];
              the 1/sqrt(dh) scale is pre-folded into the q columns.
    wo_ref: (depth, heads*dh, D) bf16.  w1/b1/w2/b2: MLP weights with leading depth axis.
    """
    dh = dim_head
    x = x_ref[0].astype(jnp.float32) + pe_ref[...]                      # (S, D)

    for l in range(depth):
        # ---------------- pre-LN multi-head self-attention ----------------
        ln_a = ln_ref[2 * l]                                             # (2, D)
        xn = _layernorm(x, ln_a[0:1], ln_a[1:2]).astype(jnp.bfloat16)
        qkv = jnp.dot(xn, wqkv_ref[l],
                      preferred_element_type=jnp.float32)               # (S, 3*H*dh)
        head_outs = []
        for h in range(heads):
            q = qkv[:, h * dh:(h + 1) * dh].astype(jnp.bfloat16)         # scale folded in
            k = qkv[:, (heads + h) * dh:(heads + h + 1) * dh].astype(jnp.bfloat16)
            v = qkv[:, (2 * heads + h) * dh:(2 * heads + h + 1) * dh].astype(jnp.bfloat16)
            s = jnp.dot(q, k.T, preferred_element_type=jnp.float32)      # (S, S)
            s = s - jnp.max(s, axis=-1, keepdims=True)
            e = jnp.exp(s)
            p = e * pl.reciprocal(jnp.sum(e, axis=-1, keepdims=True), approx=True)
            head_outs.append(jnp.dot(p.astype(jnp.bfloat16), v,
                                     preferred_element_type=jnp.float32))  # (S, dh)
        o = jnp.concatenate(head_outs, axis=-1).astype(jnp.bfloat16)     # (S, H*dh)
        x = x + jnp.dot(o, wo_ref[l], preferred_element_type=jnp.float32)

        # ---------------- pre-LN feed-forward ----------------
        ln_f = ln_ref[2 * l + 1]
        xn = _layernorm(x, ln_f[0:1], ln_f[1:2]).astype(jnp.bfloat16)
        hid = jnp.dot(xn, w1_ref[l], preferred_element_type=jnp.float32) + b1_ref[l]
        # TODO(synk): torch.nn.GELU() defaults to exact erf GELU; tanh approximation used.
        hid = jax.nn.gelu(hid, approximate=True)
        x = x + jnp.dot(hid.astype(jnp.bfloat16), w2_ref[l],
                        preferred_element_type=jnp.float32) + b2_ref[l]

    # ---------------- final LN + head Linear + Tanh ----------------
    ln_o = ln_ref[2 * depth]
    xn = _layernorm(x, ln_o[0:1], ln_o[1:2]).astype(jnp.bfloat16)
    y = jnp.dot(xn, head_w_ref[...], preferred_element_type=jnp.float32) + head_b_ref[...]
    o_ref[0] = jnp.tanh(y)                                               # (S, patch_dim)


# -----------------------------------------------------------------------------
# Wrapper (plain-JAX glue: layout only)
# -----------------------------------------------------------------------------
def vit_decoder_forward(params, x, cfg):
    """x: (B, num_patches**2, codebook_dim) -> (B, channels, image_size, image_size)."""
    B, S, D = x.shape
    num_patches = cfg["image_size"] // cfg["patch_size"]
    assert S == num_patches ** 2 and D == cfg["codebook_dim"]
    patch = cfg["patch_size"]
    channels = cfg["channels"]
    patch_dim = channels * patch * patch

    kern = functools.partial(
        _vit_decoder_kernel,
        depth=cfg["vit_depth"], heads=cfg["vit_heads"], dim_head=cfg["vit_head_dim"])

    def full_spec(arr):
        # Whole array resident in VMEM, same block for every grid step.
        return pl.BlockSpec(arr.shape, lambda b, n=arr.ndim: (0,) * n)

    y = pl.pallas_call(
        kern,
        grid=(B,),
        out_shape=jax.ShapeDtypeStruct((B, S, patch_dim), jnp.float32),
        in_specs=[
            pl.BlockSpec((1, S, D), lambda b: (b, 0, 0)),   # activations: one batch / step
            full_spec(params["pe"]),
            full_spec(params["ln"]),
            full_spec(params["wqkv"]),
            full_spec(params["wo"]),
            full_spec(params["w1"]),
            full_spec(params["w2"]),
            full_spec(params["b1"]),
            full_spec(params["b2"]),
            full_spec(params["head_w"]),
            full_spec(params["head_b"]),
        ],
        out_specs=pl.BlockSpec((1, S, patch_dim), lambda b: (b, 0, 0)),
        compiler_params=pltpu.CompilerParams(dimension_semantics=("parallel",)),
    )(x.astype(jnp.float32), params["pe"], params["ln"], params["wqkv"], params["wo"],
      params["w1"], params["w2"], params["b1"], params["b2"],
      params["head_w"], params["head_b"])

    # un-patchify: 'b (h w) (p1 p2 c) -> b c (h p1) (w p2)'  (pure layout, plain JAX)
    y = y.reshape(B, num_patches, num_patches, patch, patch, channels)
    y = jnp.transpose(y, (0, 5, 1, 3, 2, 4))
    return y.reshape(B, channels, num_patches * patch, num_patches * patch)


# -----------------------------------------------------------------------------
# Parameter construction (packed per-depth slabs; attention scale folded into W_q)
# -----------------------------------------------------------------------------
def posemb_sincos_2d(h, w, dim, temperature=10000.0):
    assert dim % 4 == 0
    y, x = jnp.meshgrid(jnp.arange(h, dtype=jnp.float32),
                        jnp.arange(w, dtype=jnp.float32), indexing="ij")
    omega = jnp.arange(dim // 4, dtype=jnp.float32) / (dim // 4 - 1)
    omega = 1.0 / (temperature ** omega)
    y = y.reshape(-1, 1) * omega[None, :]
    x = x.reshape(-1, 1) * omega[None, :]
    return jnp.concatenate([jnp.sin(x), jnp.cos(x), jnp.sin(y), jnp.cos(y)], axis=1)


def init_params(key, cfg):
    D = cfg["codebook_dim"]
    depth, heads, dh, mlp = (cfg["vit_depth"], cfg["vit_heads"],
                             cfg["vit_head_dim"], cfg["vit_mlp_dim"])
    num_patches = cfg["image_size"] // cfg["patch_size"]
    patch_dim = cfg["channels"] * cfg["patch_size"] ** 2
    scale = dh ** -0.5

    keys = iter(jax.random.split(key, 8 * depth + 2))

    def nrm(shape, s=0.05):
        return s * jax.random.normal(next(keys), shape, jnp.float32)

    wqkv, wo, w1, w2, b1, b2 = [], [], [], [], [], []
    for _ in range(depth):
        wq = nrm((D, heads * dh)) * scale        # fold 1/sqrt(dh) into W_q
        wk = nrm((D, heads * dh))
        wv = nrm((D, heads * dh))
        wqkv.append(jnp.concatenate([wq, wk, wv], axis=-1))   # (D, 3*H*dh)
        wo.append(nrm((heads * dh, D)))
        w1.append(nrm((D, mlp)))
        b1.append(nrm((1, mlp)))
        w2.append(nrm((mlp, D)))
        b2.append(nrm((1, D)))

    # LN slab: [attn LN_l, ff LN_l]*depth + final LN; each entry = (gamma, beta).
    ln = jnp.stack([jnp.ones((2 * depth + 1, D), jnp.float32),
                    jnp.zeros((2 * depth + 1, D), jnp.float32)], axis=1)

    return {
        "pe": posemb_sincos_2d(num_patches, num_patches, D),        # (S, D) f32
        "ln": ln,                                                    # (2*depth+1, 2, D)
        "wqkv": jnp.stack(wqkv).astype(jnp.bfloat16),                # (depth, D, 3*H*dh)
        "wo": jnp.stack(wo).astype(jnp.bfloat16),                    # (depth, H*dh, D)
        "w1": jnp.stack(w1).astype(jnp.bfloat16),                    # (depth, D, mlp)
        "w2": jnp.stack(w2).astype(jnp.bfloat16),                    # (depth, mlp, D)
        "b1": jnp.stack(b1),                                         # (depth, 1, mlp)
        "b2": jnp.stack(b2),                                         # (depth, 1, D)
        "head_w": nrm((D, patch_dim)).astype(jnp.bfloat16),          # (D, patch_dim)
        "head_b": nrm((1, patch_dim)),                               # (1, patch_dim)
    }


# -----------------------------------------------------------------------------
if __name__ == "__main__":
    cfg = dict(
        codebook_dim=32,
        image_size=16,
        patch_size=4,
        vit_depth=2,
        vit_heads=2,
        vit_head_dim=8,
        vit_mlp_dim=64,
        channels=2,
    )
    key = jax.random.PRNGKey(0)
    k_params, k_x = jax.random.split(key)
    params = init_params(k_params, cfg)

    num_patches = cfg["image_size"] // cfg["patch_size"]
    seq_len = num_patches ** 2
    x = jax.random.normal(k_x, (2, seq_len, cfg["codebook_dim"]), jnp.float32)

    fwd = jax.jit(functools.partial(vit_decoder_forward, cfg=cfg))
    out = jax.block_until_ready(fwd(params, x))

    assert out.shape == (2, cfg["channels"], cfg["image_size"], cfg["image_size"]), out.shape
    assert bool(jnp.all(jnp.isfinite(out)))
    assert bool(jnp.all(jnp.abs(out) <= 1.0 + 1e-6))   # tanh output range
    print("KERNEL_OK")
</pallas_src>

<mosaic_0001>
module attributes {stable_mosaic.version = 11 : i64} {
  func.func @_vit_decoder_kernel(%arg0: i32, %arg1: memref<1x16x32xf32, #tpu.memory_space<vmem>>, %arg2: memref<16x32xf32, #tpu.memory_space<vmem>>, %arg3: memref<5x2x32xf32, #tpu.memory_space<vmem>>, %arg4: memref<2x32x48xbf16, #tpu.memory_space<vmem>>, %arg5: memref<2x16x32xbf16, #tpu.memory_space<vmem>>, %arg6: memref<2x32x64xbf16, #tpu.memory_space<vmem>>, %arg7: memref<2x64x32xbf16, #tpu.memory_space<vmem>>, %arg8: memref<2x1x64xf32, #tpu.memory_space<vmem>>, %arg9: memref<2x1x32xf32, #tpu.memory_space<vmem>>, %arg10: memref<32x32xbf16, #tpu.memory_space<vmem>>, %arg11: memref<1x32xf32, #tpu.memory_space<vmem>>, %arg12: memref<1x16x32xf32, #tpu.memory_space<vmem>>) attributes {dimension_semantics = [#tpu.dimension_semantics<parallel>], iteration_bounds = array<i64: 2>, scalar_prefetch = 0 : i64, scratch_operands = 0 : i64, tpu.core_type = #tpu.core_type<tc>, window_params = [{transform_indices = @transform_0, window_bounds = array<i64: 1, 16, 32>}, {pipeline_mode = #tpu.pipeline_mode<synchronous>, transform_indices = @transform_1, window_bounds = array<i64: 16, 32>}, {pipeline_mode = #tpu.pipeline_mode<synchronous>, transform_indices = @transform_2, window_bounds = array<i64: 5, 2, 32>}, {pipeline_mode = #tpu.pipeline_mode<synchronous>, transform_indices = @transform_3, window_bounds = array<i64: 2, 32, 48>}, {pipeline_mode = #tpu.pipeline_mode<synchronous>, transform_indices = @transform_4, window_bounds = array<i64: 2, 16, 32>}, {pipeline_mode = #tpu.pipeline_mode<synchronous>, transform_indices = @transform_5, window_bounds = array<i64: 2, 32, 64>}, {pipeline_mode = #tpu.pipeline_mode<synchronous>, transform_indices = @transform_6, window_bounds = array<i64: 2, 64, 32>}, {pipeline_mode = #tpu.pipeline_mode<synchronous>, transform_indices = @transform_7, window_bounds = array<i64: 2, 1, 64>}, {pipeline_mode = #tpu.pipeline_mode<synchronous>, transform_indices = @transform_8, window_bounds = array<i64: 2, 1, 32>}, {pipeline_mode = #tpu.pipeline_mode<synchronous>, transform_indices = @transform_9, window_bounds = array<i64: 32, 32>}, {pipeline_mode = #tpu.pipeline_mode<synchronous>, transform_indices = @transform_10, window_bounds = array<i64: 1, 32>}, {transform_indices = @transform_11, window_bounds = array<i64: 1, 16, 32>}]} {
    %c0 = arith.constant 0 : index
    %c0_0 = arith.constant 0 : index
    %c0_1 = arith.constant 0 : index
    %0 = vector.load %arg1[%c0, %c0_0, %c0_1] : memref<1x16x32xf32, #tpu.memory_space<vmem>>, vector<1x16x32xf32>
    %1 = vector.shape_cast %0 : vector<1x16x32xf32> to vector<16x32xf32>
    %c0_2 = arith.constant 0 : index
    %c0_3 = arith.constant 0 : index
    %2 = vector.load %arg2[%c0_2, %c0_3] : memref<16x32xf32, #tpu.memory_space<vmem>>, vector<16x32xf32>
    %3 = arith.addf %1, %2 : vector<16x32xf32>
    %c0_4 = arith.constant 0 : index
    %c0_5 = arith.constant 0 : index
    %c0_6 = arith.constant 0 : index
    %4 = vector.load %arg3[%c0_4, %c0_5, %c0_6] : memref<5x2x32xf32, #tpu.memory_space<vmem>>, vector<1x2x32xf32>
    %5 = vector.shape_cast %4 : vector<1x2x32xf32> to vector<2x32xf32>
    %6 = vector.extract_strided_slice %5 {offsets = [0, 0], sizes = [1, 32], strides = [1, 1]} : vector<2x32xf32> to vector<1x32xf32>
    %7 = vector.extract_strided_slice %5 {offsets = [1, 0], sizes = [1, 32], strides = [1, 1]} : vector<2x32xf32> to vector<1x32xf32>
    %cst = arith.constant dense<0.000000e+00> : vector<16xf32>
    %8 = vector.multi_reduction <add>, %3, %cst [1] : vector<16x32xf32> to vector<16xf32>
    %9 = vector.shape_cast %8 : vector<16xf32> to vector<16x1xf32>
    %cst_7 = arith.constant 3.200000e+01 : f32
    %10 = vector.broadcast %cst_7 : f32 to vector<16x1xf32>
    %11 = arith.divf %9, %10 : vector<16x1xf32>
    %12 = vector.broadcast %11 : vector<16x1xf32> to vector<16x32xf32>
    %13 = arith.subf %3, %12 : vector<16x32xf32>
    %14 = arith.mulf %13, %13 : vector<16x32xf32>
    %cst_8 = arith.constant dense<0.000000e+00> : vector<16xf32>
    %15 = vector.multi_reduction <add>, %14, %cst_8 [1] : vector<16x32xf32> to vector<16xf32>
    %16 = vector.shape_cast %15 : vector<16xf32> to vector<16x1xf32>
    %cst_9 = arith.constant 3.200000e+01 : f32
    %17 = vector.broadcast %cst_9 : f32 to vector<16x1xf32>
    %18 = arith.divf %16, %17 : vector<16x1xf32>
    %19 = vector.broadcast %11 : vector<16x1xf32> to vector<16x32xf32>
    %20 = arith.subf %3, %19 : vector<16x32xf32>
    %cst_10 = arith.constant 9.99999974E-6 : f32
    %21 = vector.broadcast %cst_10 : f32 to vector<16x1xf32>
    %22 = arith.addf %18, %21 : vector<16x1xf32>
    %23 = math.rsqrt %22 : vector<16x1xf32>
    %24 = vector.broadcast %23 : vector<16x1xf32> to vector<16x32xf32>
    %25 = arith.mulf %20, %24 : vector<16x32xf32>
    %26 = vector.broadcast %6 : vector<1x32xf32> to vector<16x32xf32>
    %27 = arith.mulf %25, %26 : vector<16x32xf32>
    %28 = vector.broadcast %7 : vector<1x32xf32> to vector<16x32xf32>
    %29 = arith.addf %27, %28 : vector<16x32xf32>
    %30 = arith.truncf %29 : vector<16x32xf32> to vector<16x32xbf16>
    %c0_11 = arith.constant 0 : index
    %c0_12 = arith.constant 0 : index
    %c0_13 = arith.constant 0 : index
    %31 = vector.load %arg4[%c0_11, %c0_12, %c0_13] : memref<2x32x48xbf16, #tpu.memory_space<vmem>>, vector<1x32x48xbf16>
    %32 = vector.shape_cast %31 : vector<1x32x48xbf16> to vector<32x48xbf16>
    %cst_14 = arith.constant dense<0.000000e+00> : vector<16x48xf32>
    %33 = tpu.matmul %30, %32, %cst_14 {dimension_numbers = #tpu.dot_dimension_numbers<[1], [0], [0], [1], [0, 0, 1, 1], [], []>} : vector<16x32xbf16>, vector<32x48xbf16>, vector<16x48xf32> -> vector<16x48xf32>
    %34 = vector.extract_strided_slice %33 {offsets = [0, 0], sizes = [16, 8], strides = [1, 1]} : vector<16x48xf32> to vector<16x8xf32>
    %35 = arith.truncf %34 : vector<16x8xf32> to vector<16x8xbf16>
    %36 = vector.extract_strided_slice %33 {offsets = [0, 16], sizes = [16, 8], strides = [1, 1]} : vector<16x48xf32> to vector<16x8xf32>
    %37 = arith.truncf %36 : vector<16x8xf32> to vector<16x8xbf16>
    %38 = vector.extract_strided_slice %33 {offsets = [0, 32], sizes = [16, 8], strides = [1, 1]} : vector<16x48xf32> to vector<16x8xf32>
    %39 = arith.truncf %38 : vector<16x8xf32> to vector<16x8xbf16>
    %40 = tpu.transpose %37, [1, 0] : vector<16x8xbf16> -> vector<8x16xbf16>
    %cst_15 = arith.constant dense<0.000000e+00> : vector<16x16xf32>
    %41 = tpu.matmul %35, %40, %cst_15 {dimension_numbers = #tpu.dot_dimension_numbers<[1], [0], [0], [1], [0, 0, 1, 1], [], []>} : vector<16x8xbf16>, vector<8x16xbf16>, vector<16x16xf32> -> vector<16x16xf32>
    %cst_16 = arith.constant dense<0xFF800000> : vector<16xf32>
    %42 = vector.multi_reduction <maximumf>, %41, %cst_16 [1] : vector<16x16xf32> to vector<16xf32>
    %43 = vector.shape_cast %42 : vector<16xf32> to vector<16x1xf32>
    %44 = vector.broadcast %43 : vector<16x1xf32> to vector<16x16xf32>
    %45 = arith.subf %41, %44 : vector<16x16xf32>
    %46 = math.exp %45 : vector<16x16xf32>
    %cst_17 = arith.constant dense<0.000000e+00> : vector<16xf32>
    %47 = vector.multi_reduction <add>, %46, %cst_17 [1] : vector<16x16xf32> to vector<16xf32>
    %48 = vector.shape_cast %47 : vector<16xf32> to vector<16x1xf32>
    %49 = tpu.reciprocal %48 {approx = true} : vector<16x1xf32> -> vector<16x1xf32>
    %50 = vector.broadcast %49 : vector<16x1xf32> to vector<16x16xf32>
    %51 = arith.mulf %46, %50 : vector<16x16xf32>
    %52 = arith.truncf %51 : vector<16x16xf32> to vector<16x16xbf16>
    %cst_18 = arith.constant dense<0.000000e+00> : vector<16x8xf32>
    %53 = tpu.matmul %52, %39, %cst_18 {dimension_numbers = #tpu.dot_dimension_numbers<[1], [0], [0], [1], [0, 0, 1, 1], [], []>} : vector<16x16xbf16>, vector<16x8xbf16>, vector<16x8xf32> -> vector<16x8xf32>
    %54 = vector.extract_strided_slice %33 {offsets = [0, 8], sizes = [16, 8], strides = [1, 1]} : vector<16x48xf32> to vector<16x8xf32>
    %55 = arith.truncf %54 : vector<16x8xf32> to vector<16x8xbf16>
    %56 = vector.extract_strided_slice %33 {offsets = [0, 24], sizes = [16, 8], strides = [1, 1]} : vector<16x48xf32> to vector<16x8xf32>
    %57 = arith.truncf %56 : vector<16x8xf32> to vector<16x8xbf16>
    %58 = vector.extract_strided_slice %33 {offsets = [0, 40], sizes = [16, 8], strides = [1, 1]} : vector<16x48xf32> to vector<16x8xf32>
    %59 = arith.truncf %58 : vector<16x8xf32> to vector<16x8xbf16>
    %60 = tpu.transpose %57, [1, 0] : vector<16x8xbf16> -> vector<8x16xbf16>
    %cst_19 = arith.constant dense<0.000000e+00> : vector<16x16xf32>
    %61 = tpu.matmul %55, %60, %cst_19 {dimension_numbers = #tpu.dot_dimension_numbers<[1], [0], [0], [1], [0, 0, 1, 1], [], []>} : vector<16x8xbf16>, vector<8x16xbf16>, vector<16x16xf32> -> vector<16x16xf32>
    %cst_20 = arith.constant dense<0xFF800000> : vector<16xf32>
    %62 = vector.multi_reduction <maximumf>, %61, %cst_20 [1] : vector<16x16xf32> to vector<16xf32>
    %63 = vector.shape_cast %62 : vector<16xf32> to vector<16x1xf32>
    %64 = vector.broadcast %63 : vector<16x1xf32> to vector<16x16xf32>
    %65 = arith.subf %61, %64 : vector<16x16xf32>
    %66 = math.exp %65 : vector<16x16xf32>
    %cst_21 = arith.constant dense<0.000000e+00> : vector<16xf32>
    %67 = vector.multi_reduction <add>, %66, %cst_21 [1] : vector<16x16xf32> to vector<16xf32>
    %68 = vector.shape_cast %67 : vector<16xf32> to vector<16x1xf32>
    %69 = tpu.reciprocal %68 {approx = true} : vector<16x1xf32> -> vector<16x1xf32>
    %70 = vector.broadcast %69 : vector<16x1xf32> to vector<16x16xf32>
    %71 = arith.mulf %66, %70 : vector<16x16xf32>
    %72 = arith.truncf %71 : vector<16x16xf32> to vector<16x16xbf16>
    %cst_22 = arith.constant dense<0.000000e+00> : vector<16x8xf32>
    %73 = tpu.matmul %72, %59, %cst_22 {dimension_numbers = #tpu.dot_dimension_numbers<[1], [0], [0], [1], [0, 0, 1, 1], [], []>} : vector<16x16xbf16>, vector<16x8xbf16>, vector<16x8xf32> -> vector<16x8xf32>
    %74 = tpu.concatenate %53, %73 in 1 : vector<16x8xf32>, vector<16x8xf32> -> vector<16x16xf32>
    %75 = arith.truncf %74 : vector<16x16xf32> to vector<16x16xbf16>
    %c0_23 = arith.constant 0 : index
    %c0_24 = arith.constant 0 : index
    %c0_25 = arith.constant 0 : index
    %76 = vector.load %arg5[%c0_23, %c0_24, %c0_25] : memref<2x16x32xbf16, #tpu.memory_space<vmem>>, vector<1x16x32xbf16>
    %77 = vector.shape_cast %76 : vector<1x16x32xbf16> to vector<16x32xbf16>
    %cst_26 = arith.constant dense<0.000000e+00> : vector<16x32xf32>
    %78 = tpu.matmul %75, %77, %cst_26 {dimension_numbers = #tpu.dot_dimension_numbers<[1], [0], [0], [1], [0, 0, 1, 1], [], []>} : vector<16x16xbf16>, vector<16x32xbf16>, vector<16x32xf32> -> vector<16x32xf32>
    %79 = arith.addf %3, %78 : vector<16x32xf32>
    %c1 = arith.constant 1 : index
    %c0_27 = arith.constant 0 : index
    %c0_28 = arith.constant 0 : index
    %80 = vector.load %arg3[%c1, %c0_27, %c0_28] : memref<5x2x32xf32, #tpu.memory_space<vmem>>, vector<1x2x32xf32>
    %81 = vector.shape_cast %80 : vector<1x2x32xf32> to vector<2x32xf32>
    %82 = vector.extract_strided_slice %81 {offsets = [0, 0], sizes = [1, 32], strides = [1, 1]} : vector<2x32xf32> to vector<1x32xf32>
    %83 = vector.extract_strided_slice %81 {offsets = [1, 0], sizes = [1, 32], strides = [1, 1]} : vector<2x32xf32> to vector<1x32xf32>
    %cst_29 = arith.constant dense<0.000000e+00> : vector<16xf32>
    %84 = vector.multi_reduction <add>, %79, %cst_29 [1] : vector<16x32xf32> to vector<16xf32>
    %85 = vector.shape_cast %84 : vector<16xf32> to vector<16x1xf32>
    %cst_30 = arith.constant 3.200000e+01 : f32
    %86 = vector.broadcast %cst_30 : f32 to vector<16x1xf32>
    %87 = arith.divf %85, %86 : vector<16x1xf32>
    %88 = vector.broadcast %87 : vector<16x1xf32> to vector<16x32xf32>
    %89 = arith.subf %79, %88 : vector<16x32xf32>
    %90 = arith.mulf %89, %89 : vector<16x32xf32>
    %cst_31 = arith.constant dense<0.000000e+00> : vector<16xf32>
    %91 = vector.multi_reduction <add>, %90, %cst_31 [1] : vector<16x32xf32> to vector<16xf32>
    %92 = vector.shape_cast %91 : vector<16xf32> to vector<16x1xf32>
    %cst_32 = arith.constant 3.200000e+01 : f32
    %93 = vector.broadcast %cst_32 : f32 to vector<16x1xf32>
    %94 = arith.divf %92, %93 : vector<16x1xf32>
    %95 = vector.broadcast %87 : vector<16x1xf32> to vector<16x32xf32>
    %96 = arith.subf %79, %95 : vector<16x32xf32>
    %cst_33 = arith.constant 9.99999974E-6 : f32
    %97 = vector.broadcast %cst_33 : f32 to vector<16x1xf32>
    %98 = arith.addf %94, %97 : vector<16x1xf32>
    %99 = math.rsqrt %98 : vector<16x1xf32>
    %100 = vector.broadcast %99 : vector<16x1xf32> to vector<16x32xf32>
    %101 = arith.mulf %96, %100 : vector<16x32xf32>
    %102 = vector.broadcast %82 : vector<1x32xf32> to vector<16x32xf32>
    %103 = arith.mulf %101, %102 : vector<16x32xf32>
    %104 = vector.broadcast %83 : vector<1x32xf32> to vector<16x32xf32>
    %105 = arith.addf %103, %104 : vector<16x32xf32>
    %106 = arith.truncf %105 : vector<16x32xf32> to vector<16x32xbf16>
    %c0_34 = arith.constant 0 : index
    %c0_35 = arith.constant 0 : index
    %c0_36 = arith.constant 0 : index
    %107 = vector.load %arg6[%c0_34, %c0_35, %c0_36] : memref<2x32x64xbf16, #tpu.memory_space<vmem>>, vector<1x32x64xbf16>
    %108 = vector.shape_cast %107 : vector<1x32x64xbf16> to vector<32x64xbf16>
    %cst_37 = arith.constant dense<0.000000e+00> : vector<16x64xf32>
    %109 = tpu.matmul %106, %108, %cst_37 {dimension_numbers = #tpu.dot_dimension_numbers<[1], [0], [0], [1], [0, 0, 1, 1], [], []>} : vector<16x32xbf16>, vector<32x64xbf16>, vector<16x64xf32> -> vector<16x64xf32>
    %c0_38 = arith.constant 0 : index
    %c0_39 = arith.constant 0 : index
    %c0_40 = arith.constant 0 : index
    %110 = vector.load %arg8[%c0_38, %c0_39, %c0_40] : memref<2x1x64xf32, #tpu.memory_space<vmem>>, vector<1x1x64xf32>
    %111 = vector.shape_cast %110 : vector<1x1x64xf32> to vector<1x64xf32>
    %112 = vector.broadcast %111 : vector<1x64xf32> to vector<16x64xf32>
    %113 = arith.addf %109, %112 : vector<16x64xf32>
    %114 = arith.mulf %113, %113 : vector<16x64xf32>
    %115 = arith.mulf %113, %114 : vector<16x64xf32>
    %cst_41 = arith.constant 4.471500e-02 : f32
    %116 = vector.broadcast %cst_41 : f32 to vector<16x64xf32>
    %117 = arith.mulf %116, %115 : vector<16x64xf32>
    %118 = arith.addf %113, %117 : vector<16x64xf32>
    %cst_42 = arith.constant 0.797884583 : f32
    %119 = vector.broadcast %cst_42 : f32 to vector<16x64xf32>
    %120 = arith.mulf %119, %118 : vector<16x64xf32>
    %121 = math.tanh %120 : vector<16x64xf32>
    %cst_43 = arith.constant 1.000000e+00 : f32
    %122 = vector.broadcast %cst_43 : f32 to vector<16x64xf32>
    %123 = arith.addf %122, %121 : vector<16x64xf32>
    %cst_44 = arith.constant 5.000000e-01 : f32
    %124 = vector.broadcast %cst_44 : f32 to vector<16x64xf32>
    %125 = arith.mulf %124, %123 : vector<16x64xf32>
    %126 = arith.mulf %113, %125 : vector<16x64xf32>
    %127 = arith.truncf %126 : vector<16x64xf32> to vector<16x64xbf16>
    %c0_45 = arith.constant 0 : index
    %c0_46 = arith.constant 0 : index
    %c0_47 = arith.constant 0 : index
    %128 = vector.load %arg7[%c0_45, %c0_46, %c0_47] : memref<2x64x32xbf16, #tpu.memory_space<vmem>>, vector<1x64x32xbf16>
    %129 = vector.shape_cast %128 : vector<1x64x32xbf16> to vector<64x32xbf16>
    %cst_48 = arith.constant dense<0.000000e+00> : vector<16x32xf32>
    %130 = tpu.matmul %127, %129, %cst_48 {dimension_numbers = #tpu.dot_dimension_numbers<[1], [0], [0], [1], [0, 0, 1, 1], [], []>} : vector<16x64xbf16>, vector<64x32xbf16>, vector<16x32xf32> -> vector<16x32xf32>
    %131 = arith.addf %79, %130 : vector<16x32xf32>
    %c0_49 = arith.constant 0 : index
    %c0_50 = arith.constant 0 : index
    %c0_51 = arith.constant 0 : index
    %132 = vector.load %arg9[%c0_49, %c0_50, %c0_51] : memref<2x1x32xf32, #tpu.memory_space<vmem>>, vector<1x1x32xf32>
    %133 = vector.shape_cast %132 : vector<1x1x32xf32> to vector<1x32xf32>
    %134 = vector.broadcast %133 : vector<1x32xf32> to vector<16x32xf32>
    %135 = arith.addf %131, %134 : vector<16x32xf32>
    %c2 = arith.constant 2 : index
    %c0_52 = arith.constant 0 : index
    %c0_53 = arith.constant 0 : index
    %136 = vector.load %arg3[%c2, %c0_52, %c0_53] : memref<5x2x32xf32, #tpu.memory_space<vmem>>, vector<1x2x32xf32>
    %137 = vector.shape_cast %136 : vector<1x2x32xf32> to vector<2x32xf32>
    %138 = vector.extract_strided_slice %137 {offsets = [0, 0], sizes = [1, 32], strides = [1, 1]} : vector<2x32xf32> to vector<1x32xf32>
    %139 = vector.extract_strided_slice %137 {offsets = [1, 0], sizes = [1, 32], strides = [1, 1]} : vector<2x32xf32> to vector<1x32xf32>
    %cst_54 = arith.constant dense<0.000000e+00> : vector<16xf32>
    %140 = vector.multi_reduction <add>, %135, %cst_54 [1] : vector<16x32xf32> to vector<16xf32>
    %141 = vector.shape_cast %140 : vector<16xf32> to vector<16x1xf32>
    %cst_55 = arith.constant 3.200000e+01 : f32
    %142 = vector.broadcast %cst_55 : f32 to vector<16x1xf32>
    %143 = arith.divf %141, %142 : vector<16x1xf32>
    %144 = vector.broadcast %143 : vector<16x1xf32> to vector<16x32xf32>
    %145 = arith.subf %135, %144 : vector<16x32xf32>
    %146 = arith.mulf %145, %145 : vector<16x32xf32>
    %cst_56 = arith.constant dense<0.000000e+00> : vector<16xf32>
    %147 = vector.multi_reduction <add>, %146, %cst_56 [1] : vector<16x32xf32> to vector<16xf32>
    %148 = vector.shape_cast %147 : vector<16xf32> to vector<16x1xf32>
    %cst_57 = arith.constant 3.200000e+01 : f32
    %149 = vector.broadcast %cst_57 : f32 to vector<16x1xf32>
    %150 = arith.divf %148, %149 : vector<16x1xf32>
    %151 = vector.broadcast %143 : vector<16x1xf32> to vector<16x32xf32>
    %152 = arith.subf %135, %151 : vector<16x32xf32>
    %cst_58 = arith.constant 9.99999974E-6 : f32
    %153 = vector.broadcast %cst_58 : f32 to vector<16x1xf32>
    %154 = arith.addf %150, %153 : vector<16x1xf32>
    %155 = math.rsqrt %154 : vector<16x1xf32>
    %156 = vector.broadcast %155 : vector<16x1xf32> to vector<16x32xf32>
    %157 = arith.mulf %152, %156 : vector<16x32xf32>
    %158 = vector.broadcast %138 : vector<1x32xf32> to vector<16x32xf32>
    %159 = arith.mulf %157, %158 : vector<16x32xf32>
    %160 = vector.broadcast %139 : vector<1x32xf32> to vector<16x32xf32>
    %161 = arith.addf %159, %160 : vector<16x32xf32>
    %162 = arith.truncf %161 : vector<16x32xf32> to vector<16x32xbf16>
    %c1_59 = arith.constant 1 : index
    %c0_60 = arith.constant 0 : index
    %c0_61 = arith.constant 0 : index
    %163 = vector.load %arg4[%c1_59, %c0_60, %c0_61] : memref<2x32x48xbf16, #tpu.memory_space<vmem>>, vector<1x32x48xbf16>
    %164 = vector.shape_cast %163 : vector<1x32x48xbf16> to vector<32x48xbf16>
    %cst_62 = arith.constant dense<0.000000e+00> : vector<16x48xf32>
    %165 = tpu.matmul %162, %164, %cst_62 {dimension_numbers = #tpu.dot_dimension_numbers<[1], [0], [0], [1], [0, 0, 1, 1], [], []>} : vector<16x32xbf16>, vector<32x48xbf16>, vector<16x48xf32> -> vector<16x48xf32>
    %166 = vector.extract_strided_slice %165 {offsets = [0, 0], sizes = [16, 8], strides = [1, 1]} : vector<16x48xf32> to vector<16x8xf32>
    %167 = arith.truncf %166 : vector<16x8xf32> to vector<16x8xbf16>
    %168 = vector.extract_strided_slice %165 {offsets = [0, 16], sizes = [16, 8], strides = [1, 1]} : vector<16x48xf32> to vector<16x8xf32>
    %169 = arith.truncf %168 : vector<16x8xf32> to vector<16x8xbf16>
    %170 = vector.extract_strided_slice %165 {offsets = [0, 32], sizes = [16, 8], strides = [1, 1]} : vector<16x48xf32> to vector<16x8xf32>
    %171 = arith.truncf %170 : vector<16x8xf32> to vector<16x8xbf16>
    %172 = tpu.transpose %169, [1, 0] : vector<16x8xbf16> -> vector<8x16xbf16>
    %cst_63 = arith.constant dense<0.000000e+00> : vector<16x16xf32>
    %173 = tpu.matmul %167, %172, %cst_63 {dimension_numbers = #tpu.dot_dimension_numbers<[1], [0], [0], [1], [0, 0, 1, 1], [], []>} : vector<16x8xbf16>, vector<8x16xbf16>, vector<16x16xf32> -> vector<16x16xf32>
    %cst_64 = arith.constant dense<0xFF800000> : vector<16xf32>
    %174 = vector.multi_reduction <maximumf>, %173, %cst_64 [1] : vector<16x16xf32> to vector<16xf32>
    %175 = vector.shape_cast %174 : vector<16xf32> to vector<16x1xf32>
    %176 = vector.broadcast %175 : vector<16x1xf32> to vector<16x16xf32>
    %177 = arith.subf %173, %176 : vector<16x16xf32>
    %178 = math.exp %177 : vector<16x16xf32>
    %cst_65 = arith.constant dense<0.000000e+00> : vector<16xf32>
    %179 = vector.multi_reduction <add>, %178, %cst_65 [1] : vector<16x16xf32> to vector<16xf32>
    %180 = vector.shape_cast %179 : vector<16xf32> to vector<16x1xf32>
    %181 = tpu.reciprocal %180 {approx = true} : vector<16x1xf32> -> vector<16x1xf32>
    %182 = vector.broadcast %181 : vector<16x1xf32> to vector<16x16xf32>
    %183 = arith.mulf %178, %182 : vector<16x16xf32>
    %184 = arith.truncf %183 : vector<16x16xf32> to vector<16x16xbf16>
    %cst_66 = arith.constant dense<0.000000e+00> : vector<16x8xf32>
    %185 = tpu.matmul %184, %171, %cst_66 {dimension_numbers = #tpu.dot_dimension_numbers<[1], [0], [0], [1], [0, 0, 1, 1], [], []>} : vector<16x16xbf16>, vector<16x8xbf16>, vector<16x8xf32> -> vector<16x8xf32>
    %186 = vector.extract_strided_slice %165 {offsets = [0, 8], sizes = [16, 8], strides = [1, 1]} : vector<16x48xf32> to vector<16x8xf32>
    %187 = arith.truncf %186 : vector<16x8xf32> to vector<16x8xbf16>
    %188 = vector.extract_strided_slice %165 {offsets = [0, 24], sizes = [16, 8], strides = [1, 1]} : vector<16x48xf32> to vector<16x8xf32>
    %189 = arith.truncf %188 : vector<16x8xf32> to vector<16x8xbf16>
    %190 = vector.extract_strided_slice %165 {offsets = [0, 40], sizes = [16, 8], strides = [1, 1]} : vector<16x48xf32> to vector<16x8xf32>
    %191 = arith.truncf %190 : vector<16x8xf32> to vector<16x8xbf16>
    %192 = tpu.transpose %189, [1, 0] : vector<16x8xbf16> -> vector<8x16xbf16>
    %cst_67 = arith.constant dense<0.000000e+00> : vector<16x16xf32>
    %193 = tpu.matmul %187, %192, %cst_67 {dimension_numbers = #tpu.dot_dimension_numbers<[1], [0], [0], [1], [0, 0, 1, 1], [], []>} : vector<16x8xbf16>, vector<8x16xbf16>, vector<16x16xf32> -> vector<16x16xf32>
    %cst_68 = arith.constant dense<0xFF800000> : vector<16xf32>
    %194 = vector.multi_reduction <maximumf>, %193, %cst_68 [1] : vector<16x16xf32> to vector<16xf32>
    %195 = vector.shape_cast %194 : vector<16xf32> to vector<16x1xf32>
    %196 = vector.broadcast %195 : vector<16x1xf32> to vector<16x16xf32>
    %197 = arith.subf %193, %196 : vector<16x16xf32>
    %198 = math.exp %197 : vector<16x16xf32>
    %cst_69 = arith.constant dense<0.000000e+00> : vector<16xf32>
    %199 = vector.multi_reduction <add>, %198, %cst_69 [1] : vector<16x16xf32> to vector<16xf32>
    %200 = vector.shape_cast %199 : vector<16xf32> to vector<16x1xf32>
    %201 = tpu.reciprocal %200 {approx = true} : vector<16x1xf32> -> vector<16x1xf32>
    %202 = vector.broadcast %201 : vector<16x1xf32> to vector<16x16xf32>
    %203 = arith.mulf %198, %202 : vector<16x16xf32>
    %204 = arith.truncf %203 : vector<16x16xf32> to vector<16x16xbf16>
    %cst_70 = arith.constant dense<0.000000e+00> : vector<16x8xf32>
    %205 = tpu.matmul %204, %191, %cst_70 {dimension_numbers = #tpu.dot_dimension_numbers<[1], [0], [0], [1], [0, 0, 1, 1], [], []>} : vector<16x16xbf16>, vector<16x8xbf16>, vector<16x8xf32> -> vector<16x8xf32>
    %206 = tpu.concatenate %185, %205 in 1 : vector<16x8xf32>, vector<16x8xf32> -> vector<16x16xf32>
    %207 = arith.truncf %206 : vector<16x16xf32> to vector<16x16xbf16>
    %c1_71 = arith.constant 1 : index
    %c0_72 = arith.constant 0 : index
    %c0_73 = arith.constant 0 : index
    %208 = vector.load %arg5[%c1_71, %c0_72, %c0_73] : memref<2x16x32xbf16, #tpu.memory_space<vmem>>, vector<1x16x32xbf16>
    %209 = vector.shape_cast %208 : vector<1x16x32xbf16> to vector<16x32xbf16>
    %cst_74 = arith.constant dense<0.000000e+00> : vector<16x32xf32>
    %210 = tpu.matmul %207, %209, %cst_74 {dimension_numbers = #tpu.dot_dimension_numbers<[1], [0], [0], [1], [0, 0, 1, 1], [], []>} : vector<16x16xbf16>, vector<16x32xbf16>, vector<16x32xf32> -> vector<16x32xf32>
    %211 = arith.addf %135, %210 : vector<16x32xf32>
    %c3 = arith.constant 3 : index
    %c0_75 = arith.constant 0 : index
    %c0_76 = arith.constant 0 : index
    %212 = vector.load %arg3[%c3, %c0_75, %c0_76] : memref<5x2x32xf32, #tpu.memory_space<vmem>>, vector<1x2x32xf32>
    %213 = vector.shape_cast %212 : vector<1x2x32xf32> to vector<2x32xf32>
    %214 = vector.extract_strided_slice %213 {offsets = [0, 0], sizes = [1, 32], strides = [1, 1]} : vector<2x32xf32> to vector<1x32xf32>
    %215 = vector.extract_strided_slice %213 {offsets = [1, 0], sizes = [1, 32], strides = [1, 1]} : vector<2x32xf32> to vector<1x32xf32>
    %cst_77 = arith.constant dense<0.000000e+00> : vector<16xf32>
    %216 = vector.multi_reduction <add>, %211, %cst_77 [1] : vector<16x32xf32> to vector<16xf32>
    %217 = vector.shape_cast %216 : vector<16xf32> to vector<16x1xf32>
    %cst_78 = arith.constant 3.200000e+01 : f32
    %218 = vector.broadcast %cst_78 : f32 to vector<16x1xf32>
    %219 = arith.divf %217, %218 : vector<16x1xf32>
    %220 = vector.broadcast %219 : vector<16x1xf32> to vector<16x32xf32>
    %221 = arith.subf %211, %220 : vector<16x32xf32>
    %222 = arith.mulf %221, %221 : vector<16x32xf32>
    %cst_79 = arith.constant dense<0.000000e+00> : vector<16xf32>
    %223 = vector.multi_reduction <add>, %222, %cst_79 [1] : vector<16x32xf32> to vector<16xf32>
    %224 = vector.shape_cast %223 : vector<16xf32> to vector<16x1xf32>
    %cst_80 = arith.constant 3.200000e+01 : f32
    %225 = vector.broadcast %cst_80 : f32 to vector<16x1xf32>
    %226 = arith.divf %224, %225 : vector<16x1xf32>
    %227 = vector.broadcast %219 : vector<16x1xf32> to vector<16x32xf32>
    %228 = arith.subf %211, %227 : vector<16x32xf32>
    %cst_81 = arith.constant 9.99999974E-6 : f32
    %229 = vector.broadcast %cst_81 : f32 to vector<16x1xf32>
    %230 = arith.addf %226, %229 : vector<16x1xf32>
    %231 = math.rsqrt %230 : vector<16x1xf32>
    %232 = vector.broadcast %231 : vector<16x1xf32> to vector<16x32xf32>
    %233 = arith.mulf %228, %232 : vector<16x32xf32>
    %234 = vector.broadcast %214 : vector<1x32xf32> to vector<16x32xf32>
    %235 = arith.mulf %233, %234 : vector<16x32xf32>
    %236 = vector.broadcast %215 : vector<1x32xf32> to vector<16x32xf32>
    %237 = arith.addf %235, %236 : vector<16x32xf32>
    %238 = arith.truncf %237 : vector<16x32xf32> to vector<16x32xbf16>
    %c1_82 = arith.constant 1 : index
    %c0_83 = arith.constant 0 : index
    %c0_84 = arith.constant 0 : index
    %239 = vector.load %arg6[%c1_82, %c0_83, %c0_84] : memref<2x32x64xbf16, #tpu.memory_space<vmem>>, vector<1x32x64xbf16>
    %240 = vector.shape_cast %239 : vector<1x32x64xbf16> to vector<32x64xbf16>
    %cst_85 = arith.constant dense<0.000000e+00> : vector<16x64xf32>
    %241 = tpu.matmul %238, %240, %cst_85 {dimension_numbers = #tpu.dot_dimension_numbers<[1], [0], [0], [1], [0, 0, 1, 1], [], []>} : vector<16x32xbf16>, vector<32x64xbf16>, vector<16x64xf32> -> vector<16x64xf32>
    %c1_86 = arith.constant 1 : index
    %c0_87 = arith.constant 0 : index
    %c0_88 = arith.constant 0 : index
    %242 = vector.load %arg8[%c1_86, %c0_87, %c0_88] : memref<2x1x64xf32, #tpu.memory_space<vmem>>, vector<1x1x64xf32>
    %243 = vector.shape_cast %242 : vector<1x1x64xf32> to vector<1x64xf32>
    %244 = vector.broadcast %243 : vector<1x64xf32> to vector<16x64xf32>
    %245 = arith.addf %241, %244 : vector<16x64xf32>
    %246 = arith.mulf %245, %245 : vector<16x64xf32>
    %247 = arith.mulf %245, %246 : vector<16x64xf32>
    %cst_89 = arith.constant 4.471500e-02 : f32
    %248 = vector.broadcast %cst_89 : f32 to vector<16x64xf32>
    %249 = arith.mulf %248, %247 : vector<16x64xf32>
    %250 = arith.addf %245, %249 : vector<16x64xf32>
    %cst_90 = arith.constant 0.797884583 : f32
    %251 = vector.broadcast %cst_90 : f32 to vector<16x64xf32>
    %252 = arith.mulf %251, %250 : vector<16x64xf32>
    %253 = math.tanh %252 : vector<16x64xf32>
    %cst_91 = arith.constant 1.000000e+00 : f32
    %254 = vector.broadcast %cst_91 : f32 to vector<16x64xf32>
    %255 = arith.addf %254, %253 : vector<16x64xf32>
    %cst_92 = arith.constant 5.000000e-01 : f32
    %256 = vector.broadcast %cst_92 : f32 to vector<16x64xf32>
    %257 = arith.mulf %256, %255 : vector<16x64xf32>
    %258 = arith.mulf %245, %257 : vector<16x64xf32>
    %259 = arith.truncf %258 : vector<16x64xf32> to vector<16x64xbf16>
    %c1_93 = arith.constant 1 : index
    %c0_94 = arith.constant 0 : index
    %c0_95 = arith.constant 0 : index
    %260 = vector.load %arg7[%c1_93, %c0_94, %c0_95] : memref<2x64x32xbf16, #tpu.memory_space<vmem>>, vector<1x64x32xbf16>
    %261 = vector.shape_cast %260 : vector<1x64x32xbf16> to vector<64x32xbf16>
    %cst_96 = arith.constant dense<0.000000e+00> : vector<16x32xf32>
    %262 = tpu.matmul %259, %261, %cst_96 {dimension_numbers = #tpu.dot_dimension_numbers<[1], [0], [0], [1], [0, 0, 1, 1], [], []>} : vector<16x64xbf16>, vector<64x32xbf16>, vector<16x32xf32> -> vector<16x32xf32>
    %263 = arith.addf %211, %262 : vector<16x32xf32>
    %c1_97 = arith.constant 1 : index
    %c0_98 = arith.constant 0 : index
    %c0_99 = arith.constant 0 : index
    %264 = vector.load %arg9[%c1_97, %c0_98, %c0_99] : memref<2x1x32xf32, #tpu.memory_space<vmem>>, vector<1x1x32xf32>
    %265 = vector.shape_cast %264 : vector<1x1x32xf32> to vector<1x32xf32>
    %266 = vector.broadcast %265 : vector<1x32xf32> to vector<16x32xf32>
    %267 = arith.addf %263, %266 : vector<16x32xf32>
    %c4 = arith.constant 4 : index
    %c0_100 = arith.constant 0 : index
    %c0_101 = arith.constant 0 : index
    %268 = vector.load %arg3[%c4, %c0_100, %c0_101] : memref<5x2x32xf32, #tpu.memory_space<vmem>>, vector<1x2x32xf32>
    %269 = vector.shape_cast %268 : vector<1x2x32xf32> to vector<2x32xf32>
    %270 = vector.extract_strided_slice %269 {offsets = [0, 0], sizes = [1, 32], strides = [1, 1]} : vector<2x32xf32> to vector<1x32xf32>
    %271 = vector.extract_strided_slice %269 {offsets = [1, 0], sizes = [1, 32], strides = [1, 1]} : vector<2x32xf32> to vector<1x32xf32>
    %cst_102 = arith.constant dense<0.000000e+00> : vector<16xf32>
    %272 = vector.multi_reduction <add>, %267, %cst_102 [1] : vector<16x32xf32> to vector<16xf32>
    %273 = vector.shape_cast %272 : vector<16xf32> to vector<16x1xf32>
    %cst_103 = arith.constant 3.200000e+01 : f32
    %274 = vector.broadcast %cst_103 : f32 to vector<16x1xf32>
    %275 = arith.divf %273, %274 : vector<16x1xf32>
    %276 = vector.broadcast %275 : vector<16x1xf32> to vector<16x32xf32>
    %277 = arith.subf %267, %276 : vector<16x32xf32>
    %278 = arith.mulf %277, %277 : vector<16x32xf32>
    %cst_104 = arith.constant dense<0.000000e+00> : vector<16xf32>
    %279 = vector.multi_reduction <add>, %278, %cst_104 [1] : vector<16x32xf32> to vector<16xf32>
    %280 = vector.shape_cast %279 : vector<16xf32> to vector<16x1xf32>
    %cst_105 = arith.constant 3.200000e+01 : f32
    %281 = vector.broadcast %cst_105 : f32 to vector<16x1xf32>
    %282 = arith.divf %280, %281 : vector<16x1xf32>
    %283 = vector.broadcast %275 : vector<16x1xf32> to vector<16x32xf32>
    %284 = arith.subf %267, %283 : vector<16x32xf32>
    %cst_106 = arith.constant 9.99999974E-6 : f32
    %285 = vector.broadcast %cst_106 : f32 to vector<16x1xf32>
    %286 = arith.addf %282, %285 : vector<16x1xf32>
    %287 = math.rsqrt %286 : vector<16x1xf32>
    %288 = vector.broadcast %287 : vector<16x1xf32> to vector<16x32xf32>
    %289 = arith.mulf %284, %288 : vector<16x32xf32>
    %290 = vector.broadcast %270 : vector<1x32xf32> to vector<16x32xf32>
    %291 = arith.mulf %289, %290 : vector<16x32xf32>
    %292 = vector.broadcast %271 : vector<1x32xf32> to vector<16x32xf32>
    %293 = arith.addf %291, %292 : vector<16x32xf32>
    %294 = arith.truncf %293 : vector<16x32xf32> to vector<16x32xbf16>
    %c0_107 = arith.constant 0 : index
    %c0_108 = arith.constant 0 : index
    %295 = vector.load %arg10[%c0_107, %c0_108] : memref<32x32xbf16, #tpu.memory_space<vmem>>, vector<32x32xbf16>
    %cst_109 = arith.constant dense<0.000000e+00> : vector<16x32xf32>
    %296 = tpu.matmul %294, %295, %cst_109 {dimension_numbers = #tpu.dot_dimension_numbers<[1], [0], [0], [1], [0, 0, 1, 1], [], []>} : vector<16x32xbf16>, vector<32x32xbf16>, vector<16x32xf32> -> vector<16x32xf32>
    %c0_110 = arith.constant 0 : index
    %c0_111 = arith.constant 0 : index
    %297 = vector.load %arg11[%c0_110, %c0_111] : memref<1x32xf32, #tpu.memory_space<vmem>>, vector<1x32xf32>
    %298 = vector.broadcast %297 : vector<1x32xf32> to vector<16x32xf32>
    %299 = arith.addf %296, %298 : vector<16x32xf32>
    %300 = math.tanh %299 : vector<16x32xf32>
    %c0_112 = arith.constant 0 : index
    %c0_113 = arith.constant 0 : index
    %c0_114 = arith.constant 0 : index
    %301 = vector.load %arg12[%c0_112, %c0_113, %c0_114] : memref<1x16x32xf32, #tpu.memory_space<vmem>>, vector<1x16x32xf32>
    %302 = vector.shape_cast %301 : vector<1x16x32xf32> to vector<16x32xf32>
    %303 = vector.shape_cast %300 : vector<16x32xf32> to vector<1x16x32xf32>
    tpu.vector_store %arg12[%c0_112, %c0_113, %c0_114], %303 {strides = array<i32>} : memref<1x16x32xf32, #tpu.memory_space<vmem>>, vector<1x16x32xf32>,
    return
  }
  func.func @transform_0(%arg0: i32) -> (i32, i32, i32) {
    %c0_i32 = arith.constant 0 : i32
    %c0_i32_0 = arith.constant 0 : i32
    %c0_i32_1 = arith.constant 0 : i32
    return %arg0, %c0_i32, %c0_i32_0 : i32, i32, i32
  }
  func.func @transform_1(%arg0: i32) -> (i32, i32) {
    %c0_i32 = arith.constant 0 : i32
    %c0_i32_0 = arith.constant 0 : i32
    %c0_i32_1 = arith.constant 0 : i32
    return %c0_i32, %c0_i32_0 : i32, i32
  }
  func.func @transform_2(%arg0: i32) -> (i32, i32, i32) {
    %c0_i32 = arith.constant 0 : i32
    %c0_i32_0 = arith.constant 0 : i32
    %c0_i32_1 = arith.constant 0 : i32
    %c0_i32_2 = arith.constant 0 : i32
    return %c0_i32, %c0_i32_0, %c0_i32_1 : i32, i32, i32
  }
  func.func @transform_3(%arg0: i32) -> (i32, i32, i32) {
    %c0_i32 = arith.constant 0 : i32
    %c0_i32_0 = arith.constant 0 : i32
    %c0_i32_1 = arith.constant 0 : i32
    %c0_i32_2 = arith.constant 0 : i32
    return %c0_i32, %c0_i32_0, %c0_i32_1 : i32, i32, i32
  }
  func.func @transform_4(%arg0: i32) -> (i32, i32, i32) {
    %c0_i32 = arith.constant 0 : i32
    %c0_i32_0 = arith.constant 0 : i32
    %c0_i32_1 = arith.constant 0 : i32
    %c0_i32_2 = arith.constant 0 : i32
    return %c0_i32, %c0_i32_0, %c0_i32_1 : i32, i32, i32
  }
  func.func @transform_5(%arg0: i32) -> (i32, i32, i32) {
    %c0_i32 = arith.constant 0 : i32
    %c0_i32_0 = arith.constant 0 : i32
    %c0_i32_1 = arith.constant 0 : i32
    %c0_i32_2 = arith.constant 0 : i32
    return %c0_i32, %c0_i32_0, %c0_i32_1 : i32, i32, i32
  }
  func.func @transform_6(%arg0: i32) -> (i32, i32, i32) {
    %c0_i32 = arith.constant 0 : i32
    %c0_i32_0 = arith.constant 0 : i32
    %c0_i32_1 = arith.constant 0 : i32
    %c0_i32_2 = arith.constant 0 : i32
    return %c0_i32, %c0_i32_0, %c0_i32_1 : i32, i32, i32
  }
  func.func @transform_7(%arg0: i32) -> (i32, i32, i32) {
    %c0_i32 = arith.constant 0 : i32
    %c0_i32_0 = arith.constant 0 : i32
    %c0_i32_1 = arith.constant 0 : i32
    %c0_i32_2 = arith.constant 0 : i32
    return %c0_i32, %c0_i32_0, %c0_i32_1 : i32, i32, i32
  }
  func.func @transform_8(%arg0: i32) -> (i32, i32, i32) {
    %c0_i32 = arith.constant 0 : i32
    %c0_i32_0 = arith.constant 0 : i32
    %c0_i32_1 = arith.constant 0 : i32
    %c0_i32_2 = arith.constant 0 : i32
    return %c0_i32, %c0_i32_0, %c0_i32_1 : i32, i32, i32
  }
  func.func @transform_9(%arg0: i32) -> (i32, i32) {
    %c0_i32 = arith.constant 0 : i32
    %c0_i32_0 = arith.constant 0 : i32
    %c0_i32_1 = arith.constant 0 : i32
    return %c0_i32, %c0_i32_0 : i32, i32
  }
  func.func @transform_10(%arg0: i32) -> (i32, i32) {
    %c0_i32 = arith.constant 0 : i32
    %c0_i32_0 = arith.constant 0 : i32
    %c0_i32_1 = arith.constant 0 : i32
    return %c0_i32, %c0_i32_0 : i32, i32
  }
  func.func @transform_11(%arg0: i32) -> (i32, i32, i32) {
    %c0_i32 = arith.constant 0 : i32
    %c0_i32_0 = arith.constant 0 : i32
    %c0_i32_1 = arith.constant 0 : i32
    return %arg0, %c0_i32, %c0_i32_0 : i32, i32, i32
  }
}

</mosaic_0001>

<llo_original>
// kernel: vit_decoder_forward.1
$region0: #{vit_decoder_forward.1}
  #allocation0 [shape = 'u32[]', space=smem, size = 0x4, offset = 0x4, fixed_abs, tag = 'smem constant byte address 0x4 - core index']
  #allocation1 [shape = 'u32[144,128]{1,0:T(1,128)}', space=vmem, size = 0x12000, scoped, tag = 'internal scratch']
  %s0 = inlined_call_operand.vmem [shape: f32[2,16,32], index: 0, kind: input, shape index: {}]
  %s1 = inlined_call_operand.vmem [shape: f32[16,32], index: 1, kind: input, shape index: {}]
  %s2 = inlined_call_operand.hbm [shape: f32[5,2,32], index: 2, kind: input, shape index: {}]
  %s3 = inlined_call_operand.vmem [shape: bf16[2,32,48], index: 3, kind: input, shape index: {}]
  %s4 = inlined_call_operand.hbm [shape: bf16[2,16,32], index: 4, kind: input, shape index: {}]
  %s5 = inlined_call_operand.vmem [shape: bf16[2,32,64], index: 5, kind: input, shape index: {}]
  %s6 = inlined_call_operand.vmem [shape: bf16[2,64,32], index: 6, kind: input, shape index: {}]
  %s7 = inlined_call_operand.hbm [shape: f32[2,1,64], index: 7, kind: input, shape index: {}]
  %s8 = inlined_call_operand.vmem [shape: f32[2,1,32], index: 8, kind: input, shape index: {}]
  %s9 = inlined_call_operand.hbm [shape: bf16[32,32], index: 9, kind: input, shape index: {}]
  %s10 = inlined_call_operand.hbm [shape: f32[1,32], index: 10, kind: input, shape index: {}]
  %s11 = inlined_call_operand.vmem [shape: f32[2,16,32], index: 11, kind: output, shape index: {}]
  %s12 = sld [smem:[#allocation0]]
  $region97: #{vit_decoder_forward.1} parent=0
    _
  %s14 = ssub.s32 1, %s12
  %s15 = scalar_select 0, %s14, %s12
  $region1: #{vit_decoder_forward.1} parent=0
    #allocation2 [shape = 'u8[5120]{0}', space=vmem, size = 0x1400, scoped, tag = 'input window, operand 2, single buffered']
    #allocation3 [shape = 's32[2]{0}', space=sflag, size = 0x8, scoped, tag = 'scoped memory for vit_decoder_forward.1']
    #allocation4 [shape = 'u8[8192]{0}', space=vmem, size = 0x2000, scoped, tag = 'input window, operand 4, single buffered']
    #allocation5 [shape = 's32[1]{0}', space=sflag, size = 0x4, scoped, tag = 'scoped memory for vit_decoder_forward.1']
    #allocation6 [shape = 'u8[1024]{0}', space=vmem, size = 0x400, scoped, tag = 'input window, operand 7, single buffered']
    #allocation7 [shape = 'u8[8192]{0}', space=vmem, size = 0x2000, scoped, tag = 'input window, operand 9, single buffered']
    #allocation8 [shape = 's32[1]{0}', space=sflag, size = 0x4, scoped, tag = 'scoped memory for vit_decoder_forward.1']
    #allocation9 [shape = 'u8[512]{0}', space=vmem, size = 0x400, scoped, tag = 'input window, operand 10, single buffered']
    %16 = vsyncpa [#allocation3], 0
    %17 = vsyncpa [#allocation5], 0
    %18 = vsyncpa [#allocation8], 0
    loop: start=0, step=1, limit=4
    $region2: #{vit_decoder_forward.1} parent=1 // loop_pre_header
      _
    $region3: #{vit_decoder_forward.1} parent=1 // loop_header
      %s20 = sphi 0, %s24
      %p21 = scmp.ge.s32.totalorder %s20, 4
      %s30 = sphi 0, %s32
      %s33 = sphi 0, %s30
      %s34 = sphi 0, %s33
      %s50 = sphi 0, %s34
      %s54 = sphi 0, %s54
      %s56 = sphi 0, %s54
      %s57 = sphi 0, %s56
      %s71 = sphi 0, %s57
      %s75 = sphi 0, %s75
      %s77 = sphi 0, %s75
      %s78 = sphi 0, %s77
      %s92 = sphi 0, %s78
      %s96 = sphi 0, %s96
      %s98 = sphi 0, %s96
      %s99 = sphi 0, %s98
      %s113 = sphi 0, %s99
      %s117 = sphi 0, %s117
      %s119 = sphi 0, %s117
      %s120 = sphi 0, %s119
      %s134 = sphi 0, %s120
      %s138 = sphi 0, %s138
      %s140 = sphi 0, %s138
      %s141 = sphi 0, %s140
      %s155 = sphi 0, %s141
      %s159 = sphi 0, %s159
      %s161 = sphi 0, %s159
      %s162 = sphi 0, %s161
      %s176 = sphi 0, %s162
      %s180 = sphi 0, %s180
      %s182 = sphi 0, %s180
      %s183 = sphi 0, %s182
      %s197 = sphi 0, %s183
      %s201 = sphi 0, %s201
      %s203 = sphi 0, %s201
      %s204 = sphi 0, %s203
      %s218 = sphi 0, %s204
      %s222 = sphi 0, %s222
      %s224 = sphi 0, %s222
      %s225 = sphi 0, %s224
      %s239 = sphi 0, %s225
      %s243 = sphi 0, %s243
      %s245 = sphi 0, %s243
      %s246 = sphi 0, %s245
      %s260 = sphi 0, %s246
      %s266 = sphi 0, %s268
      %s269 = sphi 0, %s266
      %s270 = sphi 0, %s269
      %s286 = sphi 0, %s270
    $region4: #{vit_decoder_forward.1} parent=1 // loop_header_branch
      %23 = sbr.rel (%p21) target = $region8
    $region5: #{vit_decoder_forward.1} parent=1 // loop_body
      %s25 = ssub.s32 %s20, 1
      %s26 = ssub.s32 %s20, 2
      %s27 = sadd.s32 %s20, 1
      %s28 = ssub.s32 %s20, %s27
      %p29 = scmp.eq.s32.totalorder %s28, 0
      %s31 = sadd.s32 %s30, 1
      %s32 = scalar_select %p29, %s30, %s31
      %p35 = pneg %p29
      %p36 = scmp.eq.s32.totalorder %s20, 1
      %p37 = por %p35, %p36
      %p38 = scmp.ne.s32.totalorder %s30, %s33
      %p39 = scmp.eq.s32.totalorder %s20, 0
      %p40 = por %p38, %p39
      %p41 = scmp.ne.s32.totalorder %s30, %s33
      %p42 = scmp.eq.s32.totalorder %s25, 1
      %p43 = por %p41, %p42
      %p44 = scmp.ne.s32.totalorder %s33, %s34
      %p45 = scmp.eq.s32.totalorder %s25, 0
      %p46 = por %p44, %p45
      %p47 = scmp.ne.s32.totalorder %s33, %s34
      %p48 = scmp.eq.s32.totalorder %s26, 1
      %p49 = por %p47, %p48
      %p51 = scmp.ne.s32.totalorder %s34, %s50
      %p52 = scmp.eq.s32.totalorder %s26, 0
      %p53 = por %p51, %p52
      %s55 = sadd.s32 %s54, 1
      %p58 = scmp.eq.s32.totalorder %s20, 1
      %p59 = scmp.ne.s32.totalorder %s54, %s56
      %p60 = scmp.eq.s32.totalorder %s20, 0
      %p61 = por %p59, %p60
      %p62 = scmp.ne.s32.totalorder %s54, %s56
      %p63 = scmp.eq.s32.totalorder %s25, 1
      %p64 = por %p62, %p63
      %p65 = scmp.ne.s32.totalorder %s56, %s57
      %p66 = scmp.eq.s32.totalorder %s25, 0
      %p67 = por %p65, %p66
      %p68 = scmp.ne.s32.totalorder %s56, %s57
      %p69 = scmp.eq.s32.totalorder %s26, 1
      %p70 = por %p68, %p69
      %p72 = scmp.ne.s32.totalorder %s57, %s71
      %p73 = scmp.eq.s32.totalorder %s26, 0
      %p74 = por %p72, %p73
      %s76 = sadd.s32 %s75, 1
      %p79 = scmp.eq.s32.totalorder %s20, 1
      %p80 = scmp.ne.s32.totalorder %s75, %s77
      %p81 = scmp.eq.s32.totalorder %s20, 0
      %p82 = por %p80, %p81
      %p83 = scmp.ne.s32.totalorder %s75, %s77
      %p84 = scmp.eq.s32.totalorder %s25, 1
      %p85 = por %p83, %p84
      %p86 = scmp.ne.s32.totalorder %s77, %s78
      %p87 = scmp.eq.s32.totalorder %s25, 0
      %p88 = por %p86, %p87
      %p89 = scmp.ne.s32.totalorder %s77, %s78
      %p90 = scmp.eq.s32.totalorder %s26, 1
      %p91 = por %p89, %p90
      %p93 = scmp.ne.s32.totalorder %s78, %s92
      %p94 = scmp.eq.s32.totalorder %s26, 0
      %p95 = por %p93, %p94
      %s97 = sadd.s32 %s96, 1
      %p100 = scmp.eq.s32.totalorder %s20, 1
      %p101 = scmp.ne.s32.totalorder %s96, %s98
      %p102 = scmp.eq.s32.totalorder %s20, 0
      %p103 = por %p101, %p102
      %p104 = scmp.ne.s32.totalorder %s96, %s98
      %p105 = scmp.eq.s32.totalorder %s25, 1
      %p106 = por %p104, %p105
      %p107 = scmp.ne.s32.totalorder %s98, %s99
      %p108 = scmp.eq.s32.totalorder %s25, 0
      %p109 = por %p107, %p108
      %p110 = scmp.ne.s32.totalorder %s98, %s99
      %p111 = scmp.eq.s32.totalorder %s26, 1
      %p112 = por %p110, %p111
      %p114 = scmp.ne.s32.totalorder %s99, %s113
      %p115 = scmp.eq.s32.totalorder %s26, 0
      %p116 = por %p114, %p115
      %s118 = sadd.s32 %s117, 1
      %p121 = scmp.eq.s32.totalorder %s20, 1
      %p122 = scmp.ne.s32.totalorder %s117, %s119
      %p123 = scmp.eq.s32.totalorder %s20, 0
      %p124 = por %p122, %p123
      %p125 = scmp.ne.s32.totalorder %s117, %s119
      %p126 = scmp.eq.s32.totalorder %s25, 1
      %p127 = por %p125, %p126
      %p128 = scmp.ne.s32.totalorder %s119, %s120
      %p129 = scmp.eq.s32.totalorder %s25, 0
      %p130 = por %p128, %p129
      %p131 = scmp.ne.s32.totalorder %s119, %s120
      %p132 = scmp.eq.s32.totalorder %s26, 1
      %p133 = por %p131, %p132
      %p135 = scmp.ne.s32.totalorder %s120, %s134
      %p136 = scmp.eq.s32.totalorder %s26, 0
      %p137 = por %p135, %p136
      %s139 = sadd.s32 %s138, 1
      %p142 = scmp.eq.s32.totalorder %s20, 1
      %p143 = scmp.ne.s32.totalorder %s138, %s140
      %p144 = scmp.eq.s32.totalorder %s20, 0
      %p145 = por %p143, %p144
      %p146 = scmp.ne.s32.totalorder %s138, %s140
      %p147 = scmp.eq.s32.totalorder %s25, 1
      %p148 = por %p146, %p147
      %p149 = scmp.ne.s32.totalorder %s140, %s141
      %p150 = scmp.eq.s32.totalorder %s25, 0
      %p151 = por %p149, %p150
      %p152 = scmp.ne.s32.totalorder %s140, %s141
      %p153 = scmp.eq.s32.totalorder %s26, 1
      %p154 = por %p152, %p153
      %p156 = scmp.ne.s32.totalorder %s141, %s155
      %p157 = scmp.eq.s32.totalorder %s26, 0
      %p158 = por %p156, %p157
      %s160 = sadd.s32 %s159, 1
      %p163 = scmp.eq.s32.totalorder %s20, 1
      %p164 = scmp.ne.s32.totalorder %s159, %s161
      %p165 = scmp.eq.s32.totalorder %s20, 0
      %p166 = por %p164, %p165
      %p167 = scmp.ne.s32.totalorder %s159, %s161
      %p168 = scmp.eq.s32.totalorder %s25, 1
      %p169 = por %p167, %p168
      %p170 = scmp.ne.s32.totalorder %s161, %s162
      %p171 = scmp.eq.s32.totalorder %s25, 0
      %p172 = por %p170, %p171
      %p173 = scmp.ne.s32.totalorder %s161, %s162
      %p174 = scmp.eq.s32.totalorder %s26, 1
      %p175 = por %p173, %p174
      %p177 = scmp.ne.s32.totalorder %s162, %s176
      %p178 = scmp.eq.s32.totalorder %s26, 0
      %p179 = por %p177, %p178
      %s181 = sadd.s32 %s180, 1
      %p184 = scmp.eq.s32.totalorder %s20, 1
      %p185 = scmp.ne.s32.totalorder %s180, %s182
      %p186 = scmp.eq.s32.totalorder %s20, 0
      %p187 = por %p185, %p186
      %p188 = scmp.ne.s32.totalorder %s180, %s182
      %p189 = scmp.eq.s32.totalorder %s25, 1
      %p190 = por %p188, %p189
      %p191 = scmp.ne.s32.totalorder %s182, %s183
      %p192 = scmp.eq.s32.totalorder %s25, 0
      %p193 = por %p191, %p192
      %p194 = scmp.ne.s32.totalorder %s182, %s183
      %p195 = scmp.eq.s32.totalorder %s26, 1
      %p196 = por %p194, %p195
      %p198 = scmp.ne.s32.totalorder %s183, %s197
      %p199 = scmp.eq.s32.totalorder %s26, 0
      %p200 = por %p198, %p199
      %s202 = sadd.s32 %s201, 1
      %p205 = scmp.eq.s32.totalorder %s20, 1
      %p206 = scmp.ne.s32.totalorder %s201, %s203
      %p207 = scmp.eq.s32.totalorder %s20, 0
      %p208 = por %p206, %p207
      %p209 = scmp.ne.s32.totalorder %s201, %s203
      %p210 = scmp.eq.s32.totalorder %s25, 1
      %p211 = por %p209, %p210
      %p212 = scmp.ne.s32.totalorder %s203, %s204
      %p213 = scmp.eq.s32.totalorder %s25, 0
      %p214 = por %p212, %p213
      %p215 = scmp.ne.s32.totalorder %s203, %s204
      %p216 = scmp.eq.s32.totalorder %s26, 1
      %p217 = por %p215, %p216
      %p219 = scmp.ne.s32.totalorder %s204, %s218
      %p220 = scmp.eq.s32.totalorder %s26, 0
      %p221 = por %p219, %p220
      %s223 = sadd.s32 %s222, 1
      %p226 = scmp.eq.s32.totalorder %s20, 1
      %p227 = scmp.ne.s32.totalorder %s222, %s224
      %p228 = scmp.eq.s32.totalorder %s20, 0
      %p229 = por %p227, %p228
      %p230 = scmp.ne.s32.totalorder %s222, %s224
      %p231 = scmp.eq.s32.totalorder %s25, 1
      %p232 = por %p230, %p231
      %p233 = scmp.ne.s32.totalorder %s224, %s225
      %p234 = scmp.eq.s32.totalorder %s25, 0
      %p235 = por %p233, %p234
      %p236 = scmp.ne.s32.totalorder %s224, %s225
      %p237 = scmp.eq.s32.totalorder %s26, 1
      %p238 = por %p236, %p237
      %p240 = scmp.ne.s32.totalorder %s225, %s239
      %p241 = scmp.eq.s32.totalorder %s26, 0
      %p242 = por %p240, %p241
      %s244 = sadd.s32 %s243, 1
      %p247 = scmp.eq.s32.totalorder %s20, 1
      %p248 = scmp.ne.s32.totalorder %s243, %s245
      %p249 = scmp.eq.s32.totalorder %s20, 0
      %p250 = por %p248, %p249
      %p251 = scmp.ne.s32.totalorder %s243, %s245
      %p252 = scmp.eq.s32.totalorder %s25, 1
      %p253 = por %p251, %p252
      %p254 = scmp.ne.s32.totalorder %s245, %s246
      %p255 = scmp.eq.s32.totalorder %s25, 0
      %p256 = por %p254, %p255
      %p257 = scmp.ne.s32.totalorder %s245, %s246
      %p258 = scmp.eq.s32.totalorder %s26, 1
      %p259 = por %p257, %p258
      %p261 = scmp.ne.s32.totalorder %s246, %s260
      %p262 = scmp.eq.s32.totalorder %s26, 0
      %p263 = por %p261, %p262
      %s264 = ssub.s32 %s20, %s27
      %p265 = scmp.eq.s32.totalorder %s264, 0
      %s267 = sadd.s32 %s266, 1
      %s268 = scalar_select %p265, %s266, %s267
      %p271 = pneg %p265
      %p272 = scmp.eq.s32.totalorder %s20, 1
      %p273 = por %p271, %p272
      %p274 = scmp.ne.s32.totalorder %s266, %s269
      %p275 = scmp.eq.s32.totalorder %s20, 0
      %p276 = por %p274, %p275
      %p277 = scmp.ne.s32.totalorder %s266, %s269
      %p278 = scmp.eq.s32.totalorder %s25, 1
      %p279 = por %p277, %p278
      %p280 = scmp.ne.s32.totalorder %s269, %s270
      %p281 = scmp.eq.s32.totalorder %s25, 0
      %p282 = por %p280, %p281
      %p283 = scmp.ne.s32.totalorder %s269, %s270
      %p284 = scmp.eq.s32.totalorder %s26, 1
      %p285 = por %p283, %p284
      %p287 = scmp.ne.s32.totalorder %s270, %s286
      %p288 = scmp.eq.s32.totalorder %s26, 0
      %p289 = por %p287, %p288
      %p290 = scmp.le.s32.totalorder 1, %s20
      %p291 = scmp.lt.s32.totalorder %s20, 3
      %p292 = pnand %p290, %p291
      %p293 = pneg %p292
      // Predicated region
      $region9: #{vit_decoder_forward.1} parent=5 // pred_check
        _
      $region10: #{vit_decoder_forward.1} parent=5 // pred_check_branch
        %295 = sbr.rel (%p292) target = $region12
      $region11: #{vit_decoder_forward.1} parent=5 // pred_region
        %s296 = ssub.s32 %s20, 1
        // Predicated region
        $region13: #{vit_decoder_forward.1} parent=11 // pred_check
          %p297 = pneg %p67
        $region14: #{vit_decoder_forward.1} parent=11 // pred_check_branch
          %299 = sbr.rel (%p297) target = $region16
        $region15: #{vit_decoder_forward.1} parent=11 // pred_region
          _
        $region16: #{vit_decoder_forward.1} parent=11 // pred_fallthru
          _
        // Predicated region
        $region17: #{vit_decoder_forward.1} parent=11 // pred_check
          %p300 = pneg %p88
        $region18: #{vit_decoder_forward.1} parent=11 // pred_check_branch
          %302 = sbr.rel (%p300) target = $region20
        $region19: #{vit_decoder_forward.1} parent=11 // pred_region
          %s304 = ssub.s32 160, 160
          %305 = vsyncadd [#allocation3], %s304
          %s306 = sshll.u32 [#allocation2], 4
          %s307 = int_to_ptr.vmem [resolvable:$true] %s306
          %312 = dma.hbm_to_vmem [thread:$0]  %s2, 160, %s307, [#allocation3], 32, 32, 2
        $region20: #{vit_decoder_forward.1} parent=11 // pred_fallthru
          _
        // Predicated region
        $region21: #{vit_decoder_forward.1} parent=11 // pred_check
          %p313 = pneg %p109
        $region22: #{vit_decoder_forward.1} parent=11 // pred_check_branch
          %315 = sbr.rel (%p313) target = $region24
        $region23: #{vit_decoder_forward.1} parent=11 // pred_region
          _
        $region24: #{vit_decoder_forward.1} parent=11 // pred_fallthru
          _
        // Predicated region
        $region25: #{vit_decoder_forward.1} parent=11 // pred_check
          %p316 = pneg %p130
        $region26: #{vit_decoder_forward.1} parent=11 // pred_check_branch
          %318 = sbr.rel (%p316) target = $region28
        $region27: #{vit_decoder_forward.1} parent=11 // pred_region
          %s320 = ssub.s32 256, 256
          %321 = vsyncadd [#allocation5], %s320
          %s322 = sshll.u32 [#allocation4], 4
          %s323 = int_to_ptr.vmem [resolvable:$true] %s322
          %328 = dma.hbm_to_vmem [thread:$0]  %s4, 256, %s323, [#allocation5], 64, 64, 4
        $region28: #{vit_decoder_forward.1} parent=11 // pred_fallthru
          _
        // Predicated region
        $region29: #{vit_decoder_forward.1} parent=11 // pred_check
          %p329 = pneg %p151
        $region30: #{vit_decoder_forward.1} parent=11 // pred_check_branch
          %331 = sbr.rel (%p329) target = $region32
        $region31: #{vit_decoder_forward.1} parent=11 // pred_region
          _
        $region32: #{vit_decoder_forward.1} parent=11 // pred_fallthru
          _
        // Predicated region
        $region33: #{vit_decoder_forward.1} parent=11 // pred_check
          %p332 = pneg %p172
        $region34: #{vit_decoder_forward.1} parent=11 // pred_check_branch
          %334 = sbr.rel (%p332) target = $region36
        $region35: #{vit_decoder_forward.1} parent=11 // pred_region
          _
        $region36: #{vit_decoder_forward.1} parent=11 // pred_fallthru
          _
        // Predicated region
        $region37: #{vit_decoder_forward.1} parent=11 // pred_check
          %p335 = pneg %p193
        $region38: #{vit_decoder_forward.1} parent=11 // pred_check_branch
          %337 = sbr.rel (%p335) target = $region40
        $region39: #{vit_decoder_forward.1} parent=11 // pred_region
          %s339 = ssub.s32 32, 32
          %340 = vsyncadd [#allocation5], %s339
          %s341 = sshll.u32 [#allocation6], 4
          %s342 = int_to_ptr.vmem [resolvable:$true] %s341
          %347 = dma.hbm_to_vmem [thread:$0]  %s7, 32, %s342, [#allocation5], 16, 16, 1
        $region40: #{vit_decoder_forward.1} parent=11 // pred_fallthru
          _
        // Predicated region
        $region41: #{vit_decoder_forward.1} parent=11 // pred_check
          %p348 = pneg %p214
        $region42: #{vit_decoder_forward.1} parent=11 // pred_check_branch
          %350 = sbr.rel (%p348) target = $region44
        $region43: #{vit_decoder_forward.1} parent=11 // pred_region
          _
        $region44: #{vit_decoder_forward.1} parent=11 // pred_fallthru
          _
        // Predicated region
        $region45: #{vit_decoder_forward.1} parent=11 // pred_check
          %p351 = pneg %p235
        $region46: #{vit_decoder_forward.1} parent=11 // pred_check_branch
          %353 = sbr.rel (%p351) target = $region48
        $region47: #{vit_decoder_forward.1} parent=11 // pred_region
          %s355 = ssub.s32 256, 256
          %356 = vsyncadd [#allocation8], %s355
          %s357 = sshll.u32 [#allocation7], 4
          %s358 = int_to_ptr.vmem [resolvable:$true] %s357
          %363 = dma.hbm_to_vmem [thread:$0]  %s9, 256, %s358, [#allocation8], 64, 64, 4
        $region48: #{vit_decoder_forward.1} parent=11 // pred_fallthru
          _
        // Predicated region
        $region49: #{vit_decoder_forward.1} parent=11 // pred_check
          %p364 = pneg %p256
        $region50: #{vit_decoder_forward.1} parent=11 // pred_check_branch
          %366 = sbr.rel (%p364) target = $region52
        $region51: #{vit_decoder_forward.1} parent=11 // pred_region
          %s368 = ssub.s32 16, 16
          %369 = vsyncadd [#allocation8], %s368
          %s371 = sshll.u32 [#allocation9], 4
          %s372 = int_to_ptr.vmem [resolvable:$true] %s371
          %374 = dma.hbm_to_vmem [thread:$0]  %s10, 16, %s372, [#allocation8]
        $region52: #{vit_decoder_forward.1} parent=11 // pred_fallthru
          _
      $region12: #{vit_decoder_forward.1} parent=5 // pred_fallthru
        _
      %p375 = scmp.lt.s32.totalorder %s20, 2
      // Predicated region
      $region53: #{vit_decoder_forward.1} parent=5 // pred_check
        %p376 = pneg %p375
      $region54: #{vit_decoder_forward.1} parent=5 // pred_check_branch
        %378 = sbr.rel (%p376) target = $region56
      $region55: #{vit_decoder_forward.1} parent=5 // pred_region
        // Predicated region
        $region57: #{vit_decoder_forward.1} parent=55 // pred_check
          %p379 = pneg %p40
        $region58: #{vit_decoder_forward.1} parent=55 // pred_check_branch
          %381 = sbr.rel (%p379) target = $region60
        $region59: #{vit_decoder_forward.1} parent=55 // pred_region
          %p382 = scmp.lt.s32.totalorder %s20, 1
          %s383 = scalar_select %p382, %s20, 1
          %s384 = smul.addr %s383, 2
          %s385 = smul.addr %s384, 8
          %s386 = scalar_lea.vmem %s0, %s385
        $region60: #{vit_decoder_forward.1} parent=55 // pred_fallthru
          _
      $region56: #{vit_decoder_forward.1} parent=5 // pred_fallthru
        _
      %p387 = scmp.le.s32.totalorder 1, %s20
      %p388 = scmp.lt.s32.totalorder %s20, 3
      %p389 = pnand %p387, %p388
      %p390 = pneg %p389
      // Predicated region
      $region61: #{vit_decoder_forward.1} parent=5 // pred_check
        _
      $region62: #{vit_decoder_forward.1} parent=5 // pred_check_branch
        %392 = sbr.rel (%p389) target = $region64
      $region63: #{vit_decoder_forward.1} parent=5 // pred_region
        %s393 = ssub.s32 %s20, 1
        // Predicated region
        $region65: #{vit_decoder_forward.1} parent=63 // pred_check
          %p394 = pneg %p88
        $region66: #{vit_decoder_forward.1} parent=63 // pred_check_branch
          %396 = sbr.rel (%p394) target = $region68
        $region67: #{vit_decoder_forward.1} parent=63 // pred_region
          %397 = dma.done [#allocation3], 160
        $region68: #{vit_decoder_forward.1} parent=63 // pred_fallthru
          _
        // Predicated region
        $region69: #{vit_decoder_forward.1} parent=63 // pred_check
          %p398 = pneg %p130
        $region70: #{vit_decoder_forward.1} parent=63 // pred_check_branch
          %400 = sbr.rel (%p398) target = $region72
        $region71: #{vit_decoder_forward.1} parent=63 // pred_region
          %401 = dma.done [#allocation5], 256
        $region72: #{vit_decoder_forward.1} parent=63 // pred_fallthru
          _
        // Predicated region
        $region73: #{vit_decoder_forward.1} parent=63 // pred_check
          %p402 = pneg %p193
        $region74: #{vit_decoder_forward.1} parent=63 // pred_check_branch
          %404 = sbr.rel (%p402) target = $region76
        $region75: #{vit_decoder_forward.1} parent=63 // pred_region
          %405 = dma.done [#allocation5], 32
        $region76: #{vit_decoder_forward.1} parent=63 // pred_fallthru
          _
        // Predicated region
        $region77: #{vit_decoder_forward.1} parent=63 // pred_check
          %p406 = pneg %p235
        $region78: #{vit_decoder_forward.1} parent=63 // pred_check_branch
          %408 = sbr.rel (%p406) target = $region80
        $region79: #{vit_decoder_forward.1} parent=63 // pred_region
          %409 = dma.done [#allocation8], 256
        $region80: #{vit_decoder_forward.1} parent=63 // pred_fallthru
          _
        // Predicated region
        $region81: #{vit_decoder_forward.1} parent=63 // pred_check
          %p410 = pneg %p256
        $region82: #{vit_decoder_forward.1} parent=63 // pred_check_branch
          %412 = sbr.rel (%p410) target = $region84
        $region83: #{vit_decoder_forward.1} parent=63 // pred_region
          %413 = dma.done [#allocation8], 16
        $region84: #{vit_decoder_forward.1} parent=63 // pred_fallthru
          _
        %p414 = scmp.lt.s32.totalorder %s25, 1
        %s415 = scalar_select %p414, %s25, 1
        %s416 = smul.addr %s415, 2
        %s417 = smul.addr %s416, 8
        %s418 = scalar_lea.vmem %s0, %s417
        %p419 = pneg %p46
        %p420 = pneg %p43
        %p421 = pneg %p67
        %p422 = pneg %p64
        %p423 = pneg %p88
        %p424 = pneg %p85
        %p425 = pneg %p109
        %p426 = pneg %p106
        %p427 = pneg %p130
        %p428 = pneg %p127
        %p429 = pneg %p151
        %p430 = pneg %p148
        %p431 = pneg %p172
        %p432 = pneg %p169
        %p433 = pneg %p193
        %p434 = pneg %p190
        %p435 = pneg %p214
        %p436 = pneg %p211
        %p437 = pneg %p235
        %p438 = pneg %p232
        %p439 = pneg %p256
        %p440 = pneg %p253
        %p441 = pneg %p282
        %p442 = pneg %p279
        %p443 = scmp.lt.s32.totalorder %s25, 1
        %s444 = scalar_select %p443, %s25, 1
        %s445 = smul.addr %s444, 2
        %s446 = smul.addr %s445, 8
        %s447 = scalar_lea.vmem %s11, %s446
        %p448 = scmp.lt.s32.totalorder %s25, 1
        %s449 = scalar_select %p448, %s25, 1
        %s450 = smul.addr %s449, 2
        %s451 = smul.addr %s450, 8
        %s452 = scalar_lea.vmem %s0, %s451
        %p453 = scmp.lt.s32.totalorder %s25, 1
        %s454 = scalar_select %p453, %s25, 1
        %s455 = smul.addr %s454, 2
        %s456 = smul.addr %s455, 8
        %s457 = scalar_lea.vmem %s11, %s456
        %v459 = vld [vmem:[%s452] sm:$0xff]
        %v460 = vld [vmem:[%s452 + $0x8] sm:$0xff]
        %v461 = vld [vmem:[%s1] sm:$0xff]
        %v462 = vld [vmem:[%s1 + $0x8] sm:$0xff]
        %v463 = vadd.f32 %v459, %v461
        %v464 = vadd.f32 %v460, %v462
        %v465 = vld [vmem:[#allocation2] sm:$0x3]
        %vm466 = vcmask 261120
        %v467 = vsel %vm466, %v463, 0.0
        %468 = vadd.xlane.f32.xlu0 %v467
        %v469 = vpop.xlane.xlu0 %468
        %v470 = vsel %vm466, %v464, 0.0
        %471 = vadd.xlane.f32.xlu0 %v470
        %v472 = vpop.xlane.xlu0 %471
        %v473 = vrcp.pop 32.0
        %v474 = vmul.f32 %v469, %v473
        %v475 = vmul.f32 %v472, %v473
        %v476 = vsub.f32 %v463, %v474
        %v477 = vsub.f32 %v464, %v475
        %v478 = vmul.f32 %v476, %v476
        %v479 = vmul.f32 %v477, %v477
        %v480 = vsel %vm466, %v478, 0.0
        %481 = vadd.xlane.f32.xlu0 %v480
        %v482 = vpop.xlane.xlu0 %481
        %v483 = vsel %vm466, %v479, 0.0
        %484 = vadd.xlane.f32.xlu0 %v483
        %v485 = vpop.xlane.xlu0 %484
        %v486 = vmul.f32 %v482, %v473
        %v487 = vmul.f32 %v485, %v473
        %v488 = vadd.f32 %v486, 1e-05
        %v489 = vadd.f32 %v487, 1e-05
        %v490 = vrsqrt.pop %v488
        %v491 = vrsqrt.pop %v489
        %v492 = vmul.f32 %v476, %v490
        %v493 = vmul.f32 %v477, %v491
        %v494 = vlaneseq
        %v495 = vshrl.u32 %v494, 7
        %v496 = vsub.s32 0, %v495
        %v497 = vrot.slane %v465, %v496
        %v498 = vmul.f32 %v492, %v497
        %v499 = vmul.f32 %v493, %v497
        %v500 = vlaneseq
        %v501 = vshrl.u32 %v500, 7
        %v502 = vsub.s32 1, %v501
        %v503 = vrot.slane %v465, %v502
        %v504 = vadd.f32 %v498, %v503
        %v505 = vadd.f32 %v499, %v503
        %v506 = vpack.c.bf16 %v505, %v504
        %v507 = vld [vmem:[%s3] sm:$0xf]
        %v508 = vld [vmem:[%s3 + $0x4] sm:$0xf]
        %v509 = vld [vmem:[%s3 + $0x8] sm:$0xf]
        %v510 = vld [vmem:[%s3 + $0xc] sm:$0xf]
        %v515 = vunpack.c.l.b16 %v507
        %v516 = vunpack.c.l.b16 %v508
        %v517 = vunpack.c.l.b16 %v509
        %v518 = vunpack.c.l.b16 %v510
        %v519 = vpack.c.b16 %v516, %v515
        %v520 = vpack.c.b16 %v518, %v517
        %v524 = vsel %vm466, %v506, 0
        %526 = vmatprep.subr.bf16.mxu0 0
        %527 = vmatpush1.bf16.msra.mxu0 %v519
        %528 = vmatprep.subr.bf16.mxu0 0
        %529 = vmatpush1.bf16.msra.mxu0 %v520
        %530 = vmatprep.subr.bf16.mxu0 0
        %531 = vmatpush1.bf16.msra.mxu0 0
        %532 = vmatprep.subr.bf16.mxu0 0
        %533 = vmatpush1.bf16.msra.mxu0 0
        %534 = vmatprep.subr.bf16.mxu0 0
        %535 = vmatpush1.bf16.msra.mxu0 0
        %536 = vmatprep.subr.bf16.mxu0 0
        %537 = vmatpush1.bf16.msra.mxu0 0
        %538 = vmatprep.subr.bf16.mxu0 0
        %539 = vmatpush1.bf16.msra.mxu0 0
        %540 = vmatprep.subr.bf16.mxu0 0
        %541 = vmatpush1.bf16.msra.mxu0 0
        %542 = vmatprep.subr.bf16.mxu0 0
        %543 = vmatpush1.bf16.msra.mxu0 0
        %544 = vmatprep.subr.bf16.mxu0 0
        %545 = vmatpush1.bf16.msra.mxu0 0
        %546 = vmatprep.subr.bf16.mxu0 0
        %547 = vmatpush1.bf16.msra.mxu0 0
        %548 = vmatprep.subr.bf16.mxu0 0
        %549 = vmatpush1.bf16.msra.mxu0 0
        %550 = vmatprep.subr.bf16.mxu0 0
        %551 = vmatpush1.bf16.msra.mxu0 0
        %552 = vmatprep.subr.bf16.mxu0 0
        %553 = vmatpush1.bf16.msra.mxu0 0
        %554 = vmatprep.subr.bf16.mxu0 0
        %555 = vmatpush1.bf16.msra.mxu0 0
        %556 = vmatprep.subr.bf16.mxu0 0
        %557 = vmatpush1.bf16.msra.mxu0 0
        %558 = vmatprep.mubr.bf16.mxu0 0
        %559 = vmatmul.mubr.bf16.gmra.mrb[0].mxu0 %v524
        %v560 = vpop.f32.mrb[0].mxu0
        %v561 = vadd.f32 0.0, %v560
        %v562 = vpop.f32.mrb[0].mxu0
        %v563 = vpop.f32.mrb[0].mxu0
        %v564 = vadd.f32 0.0, %v563
        %v565 = vpop.f32.mrb[0].mxu0
        %566 = vdwg.mxu0
        %v567 = vpack.c.bf16 %v564, %v561
        %569 = vrot.lane.b32.xlu0 %v567, 112
        %v570 = vpop.permute.xlu0 %569
        %vm571 = vcmask 64512
        %v573 = vsel %vm571, %v567, 0
        %v576 = vsel %vm571, %v570, 0
        %578 = vmatprep.subr.bf16.mxu0 0
        %579 = vmatpush1.bf16.xpose.msra.mxu0 %v576
        %580 = vmatprep.subr.bf16.mxu0 0
        %581 = vmatpush1.bf16.xpose.msra.mxu0 0
        %582 = vmatprep.subr.bf16.mxu0 0
        %583 = vmatpush1.bf16.xpose.msra.mxu0 0
        %584 = vmatprep.subr.bf16.mxu0 0
        %585 = vmatpush1.bf16.xpose.msra.mxu0 0
        %586 = vmatprep.subr.bf16.mxu0 0
        %587 = vmatpush1.bf16.xpose.msra.mxu0 0
        %588 = vmatprep.subr.bf16.mxu0 0
        %589 = vmatpush1.bf16.xpose.msra.mxu0 0
        %590 = vmatprep.subr.bf16.mxu0 0
        %591 = vmatpush1.bf16.xpose.msra.mxu0 0
        %592 = vmatprep.subr.bf16.mxu0 0
        %593 = vmatpush1.bf16.xpose.msra.mxu0 0
        %594 = vmatprep.subr.bf16.mxu0 0
        %595 = vmatpush1.bf16.xpose.msra.mxu0 0
        %596 = vmatprep.subr.bf16.mxu0 0
        %597 = vmatpush1.bf16.xpose.msra.mxu0 0
        %598 = vmatprep.subr.bf16.mxu0 0
        %599 = vmatpush1.bf16.xpose.msra.mxu0 0
        %600 = vmatprep.subr.bf16.mxu0 0
        %601 = vmatpush1.bf16.xpose.msra.mxu0 0
        %602 = vmatprep.subr.bf16.mxu0 0
        %603 = vmatpush1.bf16.xpose.msra.mxu0 0
        %604 = vmatprep.subr.bf16.mxu0 0
        %605 = vmatpush1.bf16.xpose.msra.mxu0 0
        %606 = vmatprep.subr.bf16.mxu0 0
        %607 = vmatpush1.bf16.xpose.msra.mxu0 0
        %608 = vmatprep.subr.bf16.mxu0 0
        %609 = vmatpush1.bf16.xpose.msra.mxu0 0
        %610 = vmatprep.mubr.bf16.mxu0 0
        %611 = vmatmul.mubr.bf16.gmra.mrb[0].mxu0 %v573
        %v612 = vpop.f32.mrb[0].mxu0
        %v613 = vadd.f32 0.0, %v612
        %v614 = vpop.f32.mrb[0].mxu0
        %v615 = vpop.f32.mrb[0].mxu0
        %v616 = vadd.f32 0.0, %v615
        %v617 = vpop.f32.mrb[0].mxu0
        %618 = vdwg.mxu0
        %vm619 = vcmask 130048
        %v620 = vsel %vm619, %v613, -inf
        %621 = vmax.xlane.f32.xlu0 %v620
        %v622 = vpop.xlane.xlu0 %621
        %v623 = vsel %vm619, %v616, -inf
        %624 = vmax.xlane.f32.xlu0 %v623
        %v625 = vpop.xlane.xlu0 %624
        %v626 = vsub.f32 %v613, %v622
        %v627 = vsub.f32 %v616, %v625
        %v628 = vmul.f32 %v626, 1.442695
        %v629 = vpow.pop %v628
        %v630 = vmul.f32 %v627, 1.442695
        %v631 = vpow.pop %v630
        %v632 = vsel %vm619, %v629, 0.0
        %633 = vadd.xlane.f32.xlu0 %v632
        %v634 = vpop.xlane.xlu0 %633
        %v635 = vsel %vm619, %v631, 0.0
        %636 = vadd.xlane.f32.xlu0 %v635
        %v637 = vpop.xlane.xlu0 %636
        %v638 = vrcp.pop %v634
        %v639 = vrcp.pop %v637
        %v640 = vmul.f32 %v629, %v638
        %v641 = vmul.f32 %v631, %v639
        %v642 = vpack.c.bf16 %v641, %v640
        %643 = vrot.lane.b32.xlu0 %v567, 96
        %v644 = vpop.permute.xlu0 %643
        %v647 = vsel %vm619, %v642, 0
        %649 = vmatprep.subr.bf16.mxu0 0
        %650 = vmatpush1.bf16.msra.mxu0 %v644
        %651 = vmatprep.subr.bf16.mxu0 0
        %652 = vmatpush1.bf16.msra.mxu0 0
        %653 = vmatprep.subr.bf16.mxu0 0
        %654 = vmatpush1.bf16.msra.mxu0 0
        %655 = vmatprep.subr.bf16.mxu0 0
        %656 = vmatpush1.bf16.msra.mxu0 0
        %657 = vmatprep.subr.bf16.mxu0 0
        %658 = vmatpush1.bf16.msra.mxu0 0
        %659 = vmatprep.subr.bf16.mxu0 0
        %660 = vmatpush1.bf16.msra.mxu0 0
        %661 = vmatprep.subr.bf16.mxu0 0
        %662 = vmatpush1.bf16.msra.mxu0 0
        %663 = vmatprep.subr.bf16.mxu0 0
        %664 = vmatpush1.bf16.msra.mxu0 0
        %665 = vmatprep.subr.bf16.mxu0 0
        %666 = vmatpush1.bf16.msra.mxu0 0
        %667 = vmatprep.subr.bf16.mxu0 0
        %668 = vmatpush1.bf16.msra.mxu0 0
        %669 = vmatprep.subr.bf16.mxu0 0
        %670 = vmatpush1.bf16.msra.mxu0 0
        %671 = vmatprep.subr.bf16.mxu0 0
        %672 = vmatpush1.bf16.msra.mxu0 0
        %673 = vmatprep.subr.bf16.mxu0 0
        %674 = vmatpush1.bf16.msra.mxu0 0
        %675 = vmatprep.subr.bf16.mxu0 0
        %676 = vmatpush1.bf16.msra.mxu0 0
        %677 = vmatprep.subr.bf16.mxu0 0
        %678 = vmatpush1.bf16.msra.mxu0 0
        %679 = vmatprep.subr.bf16.mxu0 0
        %680 = vmatpush1.bf16.msra.mxu0 0
        %681 = vmatprep.mubr.bf16.mxu0 0
        %682 = vmatmul.mubr.bf16.gmra.mrb[0].mxu0 %v647
        %v683 = vpop.f32.mrb[0].mxu0
        %v684 = vadd.f32 0.0, %v683
        %v685 = vpop.f32.mrb[0].mxu0
        %v686 = vpop.f32.mrb[0].mxu0
        %v687 = vadd.f32 0.0, %v686
        %v688 = vpop.f32.mrb[0].mxu0
        %689 = vdwg.mxu0
        %690 = vrot.lane.b32.xlu0 %v567, 120
        %v691 = vpop.permute.xlu0 %690
        %692 = vrot.lane.b32.xlu0 %v567, 104
        %v693 = vpop.permute.xlu0 %692
        %v695 = vsel %vm571, %v691, 0
        %v698 = vsel %vm571, %v693, 0
        %700 = vmatprep.subr.bf16.mxu0 0
        %701 = vmatpush1.bf16.xpose.msra.mxu0 %v698
        %702 = vmatprep.subr.bf16.mxu0 0
        %703 = vmatpush1.bf16.xpose.msra.mxu0 0
        %704 = vmatprep.subr.bf16.mxu0 0
        %705 = vmatpush1.bf16.xpose.msra.mxu0 0
        %706 = vmatprep.subr.bf16.mxu0 0
        %707 = vmatpush1.bf16.xpose.msra.mxu0 0
        %708 = vmatprep.subr.bf16.mxu0 0
        %709 = vmatpush1.bf16.xpose.msra.mxu0 0
        %710 = vmatprep.subr.bf16.mxu0 0
        %711 = vmatpush1.bf16.xpose.msra.mxu0 0
        %712 = vmatprep.subr.bf16.mxu0 0
        %713 = vmatpush1.bf16.xpose.msra.mxu0 0
        %714 = vmatprep.subr.bf16.mxu0 0
        %715 = vmatpush1.bf16.xpose.msra.mxu0 0
        %716 = vmatprep.subr.bf16.mxu0 0
        %717 = vmatpush1.bf16.xpose.msra.mxu0 0
        %718 = vmatprep.subr.bf16.mxu0 0
        %719 = vmatpush1.bf16.xpose.msra.mxu0 0
        %720 = vmatprep.subr.bf16.mxu0 0
        %721 = vmatpush1.bf16.xpose.msra.mxu0 0
        %722 = vmatprep.subr.bf16.mxu0 0
        %723 = vmatpush1.bf16.xpose.msra.mxu0 0
        %724 = vmatprep.subr.bf16.mxu0 0
        %725 = vmatpush1.bf16.xpose.msra.mxu0 0
        %726 = vmatprep.subr.bf16.mxu0 0
        %727 = vmatpush1.bf16.xpose.msra.mxu0 0
        %728 = vmatprep.subr.bf16.mxu0 0
        %729 = vmatpush1.bf16.xpose.msra.mxu0 0
        %730 = vmatprep.subr.bf16.mxu0 0
        %731 = vmatpush1.bf16.xpose.msra.mxu0 0
        %732 = vmatprep.mubr.bf16.mxu0 0
        %733 = vmatmul.mubr.bf16.gmra.mrb[0].mxu0 %v695
        %v734 = vpop.f32.mrb[0].mxu0
        %v735 = vadd.f32 0.0, %v734
        %v736 = vpop.f32.mrb[0].mxu0
        %v737 = vpop.f32.mrb[0].mxu0
        %v738 = vadd.f32 0.0, %v737
        %v739 = vpop.f32.mrb[0].mxu0
        %740 = vdwg.mxu0
        %v741 = vsel %vm619, %v735, -inf
        %742 = vmax.xlane.f32.xlu0 %v741
        %v743 = vpop.xlane.xlu0 %742
        %v744 = vsel %vm619, %v738, -inf
        %745 = vmax.xlane.f32.xlu0 %v744
        %v746 = vpop.xlane.xlu0 %745
        %v747 = vsub.f32 %v735, %v743
        %v748 = vsub.f32 %v738, %v746
        %v749 = vmul.f32 %v747, 1.442695
        %v750 = vpow.pop %v749
        %v751 = vmul.f32 %v748, 1.442695
        %v752 = vpow.pop %v751
        %v753 = vsel %vm619, %v750, 0.0
        %754 = vadd.xlane.f32.xlu0 %v753
        %v755 = vpop.xlane.xlu0 %754
        %v756 = vsel %vm619, %v752, 0.0
        %757 = vadd.xlane.f32.xlu0 %v756
        %v758 = vpop.xlane.xlu0 %757
        %v759 = vrcp.pop %v755
        %v760 = vrcp.pop %v758
        %v761 = vmul.f32 %v750, %v759
        %v762 = vmul.f32 %v752, %v760
        %v763 = vpack.c.bf16 %v762, %v761
        %764 = vrot.lane.b32.xlu0 %v567, 88
        %v765 = vpop.permute.xlu0 %764
        %v768 = vsel %vm619, %v763, 0
        %770 = vmatprep.subr.bf16.mxu0 0
        %771 = vmatpush1.bf16.msra.mxu0 %v765
        %772 = vmatprep.subr.bf16.mxu0 0
        %773 = vmatpush1.bf16.msra.mxu0 0
        %774 = vmatprep.subr.bf16.mxu0 0
        %775 = vmatpush1.bf16.msra.mxu0 0
        %776 = vmatprep.subr.bf16.mxu0 0
        %777 = vmatpush1.bf16.msra.mxu0 0
        %778 = vmatprep.subr.bf16.mxu0 0
        %779 = vmatpush1.bf16.msra.mxu0 0
        %780 = vmatprep.subr.bf16.mxu0 0
        %781 = vmatpush1.bf16.msra.mxu0 0
        %782 = vmatprep.subr.bf16.mxu0 0
        %783 = vmatpush1.bf16.msra.mxu0 0
        %784 = vmatprep.subr.bf16.mxu0 0
        %785 = vmatpush1.bf16.msra.mxu0 0
        %786 = vmatprep.subr.bf16.mxu0 0
        %787 = vmatpush1.bf16.msra.mxu0 0
        %788 = vmatprep.subr.bf16.mxu0 0
        %789 = vmatpush1.bf16.msra.mxu0 0
        %790 = vmatprep.subr.bf16.mxu0 0
        %791 = vmatpush1.bf16.msra.mxu0 0
        %792 = vmatprep.subr.bf16.mxu0 0
        %793 = vmatpush1.bf16.msra.mxu0 0
        %794 = vmatprep.subr.bf16.mxu0 0
        %795 = vmatpush1.bf16.msra.mxu0 0
        %796 = vmatprep.subr.bf16.mxu0 0
        %797 = vmatpush1.bf16.msra.mxu0 0
        %798 = vmatprep.subr.bf16.mxu0 0
        %799 = vmatpush1.bf16.msra.mxu0 0
        %800 = vmatprep.subr.bf16.mxu0 0
        %801 = vmatpush1.bf16.msra.mxu0 0
        %802 = vmatprep.mubr.bf16.mxu0 0
        %803 = vmatmul.mubr.bf16.gmra.mrb[0].mxu0 %v768
        %v804 = vpop.f32.mrb[0].mxu0
        %v805 = vadd.f32 0.0, %v804
        %v806 = vpop.f32.mrb[0].mxu0
        %v807 = vpop.f32.mrb[0].mxu0
        %v808 = vadd.f32 0.0, %v807
        %v809 = vpop.f32.mrb[0].mxu0
        %810 = vdwg.mxu0
        %813 = vrot.lane.b32.xlu0 %v805, 8
        %v814 = vpop.permute.xlu0 %813
        %815 = vrot.lane.b32.xlu0 %v808, 8
        %v816 = vpop.permute.xlu0 %815
        %v819 = vsel %vm571, %v684, %v814
        %v820 = vsel %vm571, %v687, %v816
        %v821 = vpack.c.bf16 %v820, %v819
        %v822 = vld [vmem:[#allocation4] sm:$0xf]
        %v823 = vld [vmem:[#allocation4 + $0x4] sm:$0xf]
        %v826 = vunpack.c.l.b16 %v822
        %v827 = vunpack.c.l.b16 %v823
        %v828 = vpack.c.b16 %v827, %v826
        %v831 = vsel %vm619, %v821, 0
        %833 = vmatprep.subr.bf16.mxu0 0
        %834 = vmatpush1.bf16.msra.mxu0 %v828
        %835 = vmatprep.subr.bf16.mxu0 0
        %836 = vmatpush1.bf16.msra.mxu0 0
        %837 = vmatprep.subr.bf16.mxu0 0
        %838 = vmatpush1.bf16.msra.mxu0 0
        %839 = vmatprep.subr.bf16.mxu0 0
        %840 = vmatpush1.bf16.msra.mxu0 0
        %841 = vmatprep.subr.bf16.mxu0 0
        %842 = vmatpush1.bf16.msra.mxu0 0
        %843 = vmatprep.subr.bf16.mxu0 0
        %844 = vmatpush1.bf16.msra.mxu0 0
        %845 = vmatprep.subr.bf16.mxu0 0
        %846 = vmatpush1.bf16.msra.mxu0 0
        %847 = vmatprep.subr.bf16.mxu0 0
        %848 = vmatpush1.bf16.msra.mxu0 0
        %849 = vmatprep.subr.bf16.mxu0 0
        %850 = vmatpush1.bf16.msra.mxu0 0
        %851 = vmatprep.subr.bf16.mxu0 0
        %852 = vmatpush1.bf16.msra.mxu0 0
        %853 = vmatprep.subr.bf16.mxu0 0
        %854 = vmatpush1.bf16.msra.mxu0 0
        %855 = vmatprep.subr.bf16.mxu0 0
        %856 = vmatpush1.bf16.msra.mxu0 0
        %857 = vmatprep.subr.bf16.mxu0 0
        %858 = vmatpush1.bf16.msra.mxu0 0
        %859 = vmatprep.subr.bf16.mxu0 0
        %860 = vmatpush1.bf16.msra.mxu0 0
        %861 = vmatprep.subr.bf16.mxu0 0
        %862 = vmatpush1.bf16.msra.mxu0 0
        %863 = vmatprep.subr.bf16.mxu0 0
        %864 = vmatpush1.bf16.msra.mxu0 0
        %865 = vmatprep.mubr.bf16.mxu0 0
        %866 = vmatmul.mubr.bf16.gmra.mrb[0].mxu0 %v831
        %v867 = vpop.f32.mrb[0].mxu0
        %v868 = vadd.f32 0.0, %v867
        %v869 = vpop.f32.mrb[0].mxu0
        %v870 = vpop.f32.mrb[0].mxu0
        %v871 = vadd.f32 0.0, %v870
        %v872 = vpop.f32.mrb[0].mxu0
        %873 = vdwg.mxu0
        %v874 = vadd.f32 %v463, %v868
        %v875 = vadd.f32 %v464, %v871
        %s876 = scalar_lea.vmem [#allocation2], 2
        %v877 = vld [vmem:[%s876] sm:$0x3]
        %v878 = vsel %vm466, %v874, 0.0
        %879 = vadd.xlane.f32.xlu0 %v878
        %v880 = vpop.xlane.xlu0 %879
        %v881 = vsel %vm466, %v875, 0.0
        %882 = vadd.xlane.f32.xlu0 %v881
        %v883 = vpop.xlane.xlu0 %882
        %v884 = vmul.f32 %v880, %v473
        %v885 = vmul.f32 %v883, %v473
        %v886 = vsub.f32 %v874, %v884
        %v887 = vsub.f32 %v875, %v885
        %v888 = vmul.f32 %v886, %v886
        %v889 = vmul.f32 %v887, %v887
        %v890 = vsel %vm466, %v888, 0.0
        %891 = vadd.xlane.f32.xlu0 %v890
        %v892 = vpop.xlane.xlu0 %891
        %v893 = vsel %vm466, %v889, 0.0
        %894 = vadd.xlane.f32.xlu0 %v893
        %v895 = vpop.xlane.xlu0 %894
        %v896 = vmul.f32 %v892, %v473
        %v897 = vmul.f32 %v895, %v473
        %v898 = vadd.f32 %v896, 1e-05
        %v899 = vadd.f32 %v897, 1e-05
        %v900 = vrsqrt.pop %v898
        %v901 = vrsqrt.pop %v899
        %v902 = vmul.f32 %v886, %v900
        %v903 = vmul.f32 %v887, %v901
        %v904 = vlaneseq
        %v905 = vshrl.u32 %v904, 7
        %v906 = vsub.s32 0, %v905
        %v907 = vrot.slane %v877, %v906
        %v908 = vmul.f32 %v902, %v907
        %v909 = vmul.f32 %v903, %v907
        %v910 = vlaneseq
        %v911 = vshrl.u32 %v910, 7
        %v912 = vsub.s32 1, %v911
        %v913 = vrot.slane %v877, %v912
        %v914 = vadd.f32 %v908, %v913
        %v915 = vadd.f32 %v909, %v913
        %v916 = vpack.c.bf16 %v915, %v914
        %v917 = vld [vmem:[%s5] sm:$0xf]
        %v918 = vld [vmem:[%s5 + $0x4] sm:$0xf]
        %v919 = vld [vmem:[%s5 + $0x8] sm:$0xf]
        %v920 = vld [vmem:[%s5 + $0xc] sm:$0xf]
        %v921 = vld [vmem:[#allocation6] sm:$0x1]
        %v923 = vlaneseq
        %v924 = vshrl.u32 %v923, 7
        %v925 = vsub.s32 0, %v924
        %v926 = vrot.slane %v921, %v925
        %v932 = vunpack.c.l.b16 %v917
        %v933 = vunpack.c.l.b16 %v918
        %v934 = vunpack.c.l.b16 %v919
        %v935 = vunpack.c.l.b16 %v920
        %v936 = vpack.c.b16 %v933, %v932
        %v937 = vpack.c.b16 %v935, %v934
        %v941 = vsel %vm466, %v916, 0
        %943 = vmatprep.subr.bf16.mxu0 0
        %944 = vmatpush1.bf16.msra.mxu0 %v936
        %945 = vmatprep.subr.bf16.mxu0 0
        %946 = vmatpush1.bf16.msra.mxu0 %v937
        %947 = vmatprep.subr.bf16.mxu0 0
        %948 = vmatpush1.bf16.msra.mxu0 0
        %949 = vmatprep.subr.bf16.mxu0 0
        %950 = vmatpush1.bf16.msra.mxu0 0
        %951 = vmatprep.subr.bf16.mxu0 0
        %952 = vmatpush1.bf16.msra.mxu0 0
        %953 = vmatprep.subr.bf16.mxu0 0
        %954 = vmatpush1.bf16.msra.mxu0 0
        %955 = vmatprep.subr.bf16.mxu0 0
        %956 = vmatpush1.bf16.msra.mxu0 0
        %957 = vmatprep.subr.bf16.mxu0 0
        %958 = vmatpush1.bf16.msra.mxu0 0
        %959 = vmatprep.subr.bf16.mxu0 0
        %960 = vmatpush1.bf16.msra.mxu0 0
        %961 = vmatprep.subr.bf16.mxu0 0
        %962 = vmatpush1.bf16.msra.mxu0 0
        %963 = vmatprep.subr.bf16.mxu0 0
        %964 = vmatpush1.bf16.msra.mxu0 0
        %965 = vmatprep.subr.bf16.mxu0 0
        %966 = vmatpush1.bf16.msra.mxu0 0
        %967 = vmatprep.subr.bf16.mxu0 0
        %968 = vmatpush1.bf16.msra.mxu0 0
        %969 = vmatprep.subr.bf16.mxu0 0
        %970 = vmatpush1.bf16.msra.mxu0 0
        %971 = vmatprep.subr.bf16.mxu0 0
        %972 = vmatpush1.bf16.msra.mxu0 0
        %973 = vmatprep.subr.bf16.mxu0 0
        %974 = vmatpush1.bf16.msra.mxu0 0
        %975 = vmatprep.mubr.bf16.mxu0 0
        %976 = vmatmul.mubr.bf16.gmra.mrb[0].mxu0 %v941
        %v977 = vpop.f32.mrb[0].mxu0
        %v978 = vadd.f32 %v926, %v977
        %v979 = vpop.f32.mrb[0].mxu0
        %v980 = vpop.f32.mrb[0].mxu0
        %v981 = vadd.f32 %v926, %v980
        %v982 = vpop.f32.mrb[0].mxu0
        %983 = vdwg.mxu0
        %v984 = vmul.f32 %v978, %v978
        %v985 = vmul.f32 %v981, %v981
        %v986 = vmul.f32 %v978, %v984
        %v987 = vmul.f32 %v981, %v985
        %v988 = vmul.f32 %v986, 0.044715
        %v989 = vmul.f32 %v987, 0.044715
        %v990 = vadd.f32 %v978, %v988
        %v991 = vadd.f32 %v981, %v989
        %v992 = vmul.f32 %v990, 0.7978846
        %v993 = vmul.f32 %v991, 0.7978846
        %v994 = vtanh.pop %v992
        %v995 = vtanh.pop %v993
        %v996 = vadd.f32 %v994, 1.0
        %v997 = vadd.f32 %v995, 1.0
        %v998 = vmul.f32 %v996, 0.5
        %v999 = vmul.f32 %v997, 0.5
        %v1000 = vmul.f32 %v978, %v998
        %v1001 = vmul.f32 %v981, %v999
        %v1002 = vpack.c.bf16 %v1001, %v1000
        %v1003 = vld [vmem:[%s6] sm:$0xf]
        %v1004 = vld [vmem:[%s6 + $0x4] sm:$0xf]
        %v1005 = vld [vmem:[%s6 + $0x8] sm:$0xf]
        %v1006 = vld [vmem:[%s6 + $0xc] sm:$0xf]
        %v1007 = vld [vmem:[%s6 + $0x10] sm:$0xf]
        %v1008 = vld [vmem:[%s6 + $0x14] sm:$0xf]
        %v1009 = vld [vmem:[%s6 + $0x18] sm:$0xf]
        %v1010 = vld [vmem:[%s6 + $0x1c] sm:$0xf]
        %v1019 = vunpack.c.l.b16 %v1003
        %v1020 = vunpack.c.l.b16 %v1004
        %v1021 = vunpack.c.l.b16 %v1005
        %v1022 = vunpack.c.l.b16 %v1006
        %v1023 = vunpack.c.l.b16 %v1007
        %v1024 = vunpack.c.l.b16 %v1008
        %v1025 = vunpack.c.l.b16 %v1009
        %v1026 = vunpack.c.l.b16 %v1010
        %v1027 = vpack.c.b16 %v1020, %v1019
        %v1028 = vpack.c.b16 %v1022, %v1021
        %v1029 = vpack.c.b16 %v1024, %v1023
        %v1030 = vpack.c.b16 %v1026, %v1025
        %vm1035 = vcmask 523264
        %v1037 = vsel %vm1035, %v1002, 0
        %1039 = vmatprep.subr.bf16.mxu0 0
        %1040 = vmatpush1.bf16.msra.mxu0 %v1027
        %1041 = vmatprep.subr.bf16.mxu0 0
        %1042 = vmatpush1.bf16.msra.mxu0 %v1028
        %1043 = vmatprep.subr.bf16.mxu0 0
        %1044 = vmatpush1.bf16.msra.mxu0 %v1029
        %1045 = vmatprep.subr.bf16.mxu0 0
        %1046 = vmatpush1.bf16.msra.mxu0 %v1030
        %1047 = vmatprep.subr.bf16.mxu0 0
        %1048 = vmatpush1.bf16.msra.mxu0 0
        %1049 = vmatprep.subr.bf16.mxu0 0
        %1050 = vmatpush1.bf16.msra.mxu0 0
        %1051 = vmatprep.subr.bf16.mxu0 0
        %1052 = vmatpush1.bf16.msra.mxu0 0
        %1053 = vmatprep.subr.bf16.mxu0 0
        %1054 = vmatpush1.bf16.msra.mxu0 0
        %1055 = vmatprep.subr.bf16.mxu0 0
        %1056 = vmatpush1.bf16.msra.mxu0 0
        %1057 = vmatprep.subr.bf16.mxu0 0
        %1058 = vmatpush1.bf16.msra.mxu0 0
        %1059 = vmatprep.subr.bf16.mxu0 0
        %1060 = vmatpush1.bf16.msra.mxu0 0
        %1061 = vmatprep.subr.bf16.mxu0 0
        %1062 = vmatpush1.bf16.msra.mxu0 0
        %1063 = vmatprep.subr.bf16.mxu0 0
        %1064 = vmatpush1.bf16.msra.mxu0 0
        %1065 = vmatprep.subr.bf16.mxu0 0
        %1066 = vmatpush1.bf16.msra.mxu0 0
        %1067 = vmatprep.subr.bf16.mxu0 0
        %1068 = vmatpush1.bf16.msra.mxu0 0
        %1069 = vmatprep.subr.bf16.mxu0 0
        %1070 = vmatpush1.bf16.msra.mxu0 0
        %1071 = vmatprep.mubr.bf16.mxu0 0
        %1072 = vmatmul.mubr.bf16.gmra.mrb[0].mxu0 %v1037
        %v1073 = vpop.f32.mrb[0].mxu0
        %v1074 = vadd.f32 0.0, %v1073
        %v1075 = vpop.f32.mrb[0].mxu0
        %v1076 = vpop.f32.mrb[0].mxu0
        %v1077 = vadd.f32 0.0, %v1076
        %v1078 = vpop.f32.mrb[0].mxu0
        %1079 = vdwg.mxu0
        %v1080 = vadd.f32 %v874, %v1074
        %v1081 = vadd.f32 %v875, %v1077
        %v1082 = vld [vmem:[%s8] sm:$0x1]
        %v1084 = vlaneseq
        %v1085 = vshrl.u32 %v1084, 7
        %v1086 = vsub.s32 0, %v1085
        %v1087 = vrot.slane %v1082, %v1086
        %v1089 = vadd.f32 %v1080, %v1087
        %v1090 = vadd.f32 %v1081, %v1087
        %s1091 = scalar_lea.vmem [#allocation2], 4
        %v1092 = vld [vmem:[%s1091] sm:$0x3]
        %v1093 = vsel %vm466, %v1089, 0.0
        %1094 = vadd.xlane.f32.xlu0 %v1093
        %v1095 = vpop.xlane.xlu0 %1094
        %v1096 = vsel %vm466, %v1090, 0.0
        %1097 = vadd.xlane.f32.xlu0 %v1096
        %v1098 = vpop.xlane.xlu0 %1097
        %v1099 = vmul.f32 %v1095, %v473
        %v1100 = vmul.f32 %v1098, %v473
        %v1101 = vsub.f32 %v1089, %v1099
        %v1102 = vsub.f32 %v1090, %v1100
        %v1103 = vmul.f32 %v1101, %v1101
        %v1104 = vmul.f32 %v1102, %v1102
        %v1105 = vsel %vm466, %v1103, 0.0
        %1106 = vadd.xlane.f32.xlu0 %v1105
        %v1107 = vpop.xlane.xlu0 %1106
        %v1108 = vsel %vm466, %v1104, 0.0
        %1109 = vadd.xlane.f32.xlu0 %v1108
        %v1110 = vpop.xlane.xlu0 %1109
        %v1111 = vmul.f32 %v1107, %v473
        %v1112 = vmul.f32 %v1110, %v473
        %v1113 = vadd.f32 %v1111, 1e-05
        %v1114 = vadd.f32 %v1112, 1e-05
        %v1115 = vrsqrt.pop %v1113
        %v1116 = vrsqrt.pop %v1114
        %v1117 = vmul.f32 %v1101, %v1115
        %v1118 = vmul.f32 %v1102, %v1116
        %v1119 = vlaneseq
        %v1120 = vshrl.u32 %v1119, 7
        %v1121 = vsub.s32 0, %v1120
        %v1122 = vrot.slane %v1092, %v1121
        %v1123 = vmul.f32 %v1117, %v1122
        %v1124 = vmul.f32 %v1118, %v1122
        %v1125 = vlaneseq
        %v1126 = vshrl.u32 %v1125, 7
        %v1127 = vsub.s32 1, %v1126
        %v1128 = vrot.slane %v1092, %v1127
        %v1129 = vadd.f32 %v1123, %v1128
        %v1130 = vadd.f32 %v1124, %v1128
        %v1131 = vpack.c.bf16 %v1130, %v1129
        %s1132 = scalar_lea.vmem %s3, 16
        %v1133 = vld [vmem:[%s1132] sm:$0xf]
        %v1134 = vld [vmem:[%s1132 + $0x4] sm:$0xf]
        %v1135 = vld [vmem:[%s1132 + $0x8] sm:$0xf]
        %v1136 = vld [vmem:[%s1132 + $0xc] sm:$0xf]
        %v1141 = vunpack.c.l.b16 %v1133
        %v1142 = vunpack.c.l.b16 %v1134
        %v1143 = vunpack.c.l.b16 %v1135
        %v1144 = vunpack.c.l.b16 %v1136
        %v1145 = vpack.c.b16 %v1142, %v1141
        %v1146 = vpack.c.b16 %v1144, %v1143
        %v1150 = vsel %vm466, %v1131, 0
        %1152 = vmatprep.subr.bf16.mxu0 0
        %1153 = vmatpush1.bf16.msra.mxu0 %v1145
        %1154 = vmatprep.subr.bf16.mxu0 0
        %1155 = vmatpush1.bf16.msra.mxu0 %v1146
        %1156 = vmatprep.subr.bf16.mxu0 0
        %1157 = vmatpush1.bf16.msra.mxu0 0
        %1158 = vmatprep.subr.bf16.mxu0 0
        %1159 = vmatpush1.bf16.msra.mxu0 0
        %1160 = vmatprep.subr.bf16.mxu0 0
        %1161 = vmatpush1.bf16.msra.mxu0 0
        %1162 = vmatprep.subr.bf16.mxu0 0
        %1163 = vmatpush1.bf16.msra.mxu0 0
        %1164 = vmatprep.subr.bf16.mxu0 0
        %1165 = vmatpush1.bf16.msra.mxu0 0
        %1166 = vmatprep.subr.bf16.mxu0 0
        %1167 = vmatpush1.bf16.msra.mxu0 0
        %1168 = vmatprep.subr.bf16.mxu0 0
        %1169 = vmatpush1.bf16.msra.mxu0 0
        %1170 = vmatprep.subr.bf16.mxu0 0
        %1171 = vmatpush1.bf16.msra.mxu0 0
        %1172 = vmatprep.subr.bf16.mxu0 0
        %1173 = vmatpush1.bf16.msra.mxu0 0
        %1174 = vmatprep.subr.bf16.mxu0 0
        %1175 = vmatpush1.bf16.msra.mxu0 0
        %1176 = vmatprep.subr.bf16.mxu0 0
        %1177 = vmatpush1.bf16.msra.mxu0 0
        %1178 = vmatprep.subr.bf16.mxu0 0
        %1179 = vmatpush1.bf16.msra.mxu0 0
        %1180 = vmatprep.subr.bf16.mxu0 0
        %1181 = vmatpush1.bf16.msra.mxu0 0
        %1182 = vmatprep.subr.bf16.mxu0 0
        %1183 = vmatpush1.bf16.msra.mxu0 0
        %1184 = vmatprep.mubr.bf16.mxu0 0
        %1185 = vmatmul.mubr.bf16.gmra.mrb[0].mxu0 %v1150
        %v1186 = vpop.f32.mrb[0].mxu0
        %v1187 = vadd.f32 0.0, %v1186
        %v1188 = vpop.f32.mrb[0].mxu0
        %v1189 = vpop.f32.mrb[0].mxu0
        %v1190 = vadd.f32 0.0, %v1189
        %v1191 = vpop.f32.mrb[0].mxu0
        %1192 = vdwg.mxu0
        %v1193 = vpack.c.bf16 %v1190, %v1187
        %1195 = vrot.lane.b32.xlu0 %v1193, 112
        %v1196 = vpop.permute.xlu0 %1195
        %v1198 = vsel %vm571, %v1193, 0
        %v1201 = vsel %vm571, %v1196, 0
        %1203 = vmatprep.subr.bf16.mxu0 0
        %1204 = vmatpush1.bf16.xpose.msra.mxu0 %v1201
        %1205 = vmatprep.subr.bf16.mxu0 0
        %1206 = vmatpush1.bf16.xpose.msra.mxu0 0
        %1207 = vmatprep.subr.bf16.mxu0 0
        %1208 = vmatpush1.bf16.xpose.msra.mxu0 0
        %1209 = vmatprep.subr.bf16.mxu0 0
        %1210 = vmatpush1.bf16.xpose.msra.mxu0 0
        %1211 = vmatprep.subr.bf16.mxu0 0
        %1212 = vmatpush1.bf16.xpose.msra.mxu0 0
        %1213 = vmatprep.subr.bf16.mxu0 0
        %1214 = vmatpush1.bf16.xpose.msra.mxu0 0
        %1215 = vmatprep.subr.bf16.mxu0 0
        %1216 = vmatpush1.bf16.xpose.msra.mxu0 0
        %1217 = vmatprep.subr.bf16.mxu0 0
        %1218 = vmatpush1.bf16.xpose.msra.mxu0 0
        %1219 = vmatprep.subr.bf16.mxu0 0
        %1220 = vmatpush1.bf16.xpose.msra.mxu0 0
        %1221 = vmatprep.subr.bf16.mxu0 0
        %1222 = vmatpush1.bf16.xpose.msra.mxu0 0
        %1223 = vmatprep.subr.bf16.mxu0 0
        %1224 = vmatpush1.bf16.xpose.msra.mxu0 0
        %1225 = vmatprep.subr.bf16.mxu0 0
        %1226 = vmatpush1.bf16.xpose.msra.mxu0 0
        %1227 = vmatprep.subr.bf16.mxu0 0
        %1228 = vmatpush1.bf16.xpose.msra.mxu0 0
        %1229 = vmatprep.subr.bf16.mxu0 0
        %1230 = vmatpush1.bf16.xpose.msra.mxu0 0
        %1231 = vmatprep.subr.bf16.mxu0 0
        %1232 = vmatpush1.bf16.xpose.msra.mxu0 0
        %1233 = vmatprep.subr.bf16.mxu0 0
        %1234 = vmatpush1.bf16.xpose.msra.mxu0 0
        %1235 = vmatprep.mubr.bf16.mxu0 0
        %1236 = vmatmul.mubr.bf16.gmra.mrb[0].mxu0 %v1198
        %v1237 = vpop.f32.mrb[0].mxu0
        %v1238 = vadd.f32 0.0, %v1237
        %v1239 = vpop.f32.mrb[0].mxu0
        %v1240 = vpop.f32.mrb[0].mxu0
        %v1241 = vadd.f32 0.0, %v1240
        %v1242 = vpop.f32.mrb[0].mxu0
        %1243 = vdwg.mxu0
        %v1244 = vsel %vm619, %v1238, -inf
        %1245 = vmax.xlane.f32.xlu0 %v1244
        %v1246 = vpop.xlane.xlu0 %1245
        %v1247 = vsel %vm619, %v1241, -inf
        %1248 = vmax.xlane.f32.xlu0 %v1247
        %v1249 = vpop.xlane.xlu0 %1248
        %v1250 = vsub.f32 %v1238, %v1246
        %v1251 = vsub.f32 %v1241, %v1249
        %v1252 = vmul.f32 %v1250, 1.442695
        %v1253 = vpow.pop %v1252
        %v1254 = vmul.f32 %v1251, 1.442695
        %v1255 = vpow.pop %v1254
        %v1256 = vsel %vm619, %v1253, 0.0
        %1257 = vadd.xlane.f32.xlu0 %v1256
        %v1258 = vpop.xlane.xlu0 %1257
        %v1259 = vsel %vm619, %v1255, 0.0
        %1260 = vadd.xlane.f32.xlu0 %v1259
        %v1261 = vpop.xlane.xlu0 %1260
        %v1262 = vrcp.pop %v1258
        %v1263 = vrcp.pop %v1261
        %v1264 = vmul.f32 %v1253, %v1262
        %v1265 = vmul.f32 %v1255, %v1263
        %v1266 = vpack.c.bf16 %v1265, %v1264
        %1267 = vrot.lane.b32.xlu0 %v1193, 96
        %v1268 = vpop.permute.xlu0 %1267
        %v1271 = vsel %vm619, %v1266, 0
        %1273 = vmatprep.subr.bf16.mxu0 0
        %1274 = vmatpush1.bf16.msra.mxu0 %v1268
        %1275 = vmatprep.subr.bf16.mxu0 0
        %1276 = vmatpush1.bf16.msra.mxu0 0
        %1277 = vmatprep.subr.bf16.mxu0 0
        %1278 = vmatpush1.bf16.msra.mxu0 0
        %1279 = vmatprep.subr.bf16.mxu0 0
        %1280 = vmatpush1.bf16.msra.mxu0 0
        %1281 = vmatprep.subr.bf16.mxu0 0
        %1282 = vmatpush1.bf16.msra.mxu0 0
        %1283 = vmatprep.subr.bf16.mxu0 0
        %1284 = vmatpush1.bf16.msra.mxu0 0
        %1285 = vmatprep.subr.bf16.mxu0 0
        %1286 = vmatpush1.bf16.msra.mxu0 0
        %1287 = vmatprep.subr.bf16.mxu0 0
        %1288 = vmatpush1.bf16.msra.mxu0 0
        %1289 = vmatprep.subr.bf16.mxu0 0
        %1290 = vmatpush1.bf16.msra.mxu0 0
        %1291 = vmatprep.subr.bf16.mxu0 0
        %1292 = vmatpush1.bf16.msra.mxu0 0
        %1293 = vmatprep.subr.bf16.mxu0 0
        %1294 = vmatpush1.bf16.msra.mxu0 0
        %1295 = vmatprep.subr.bf16.mxu0 0
        %1296 = vmatpush1.bf16.msra.mxu0 0
        %1297 = vmatprep.subr.bf16.mxu0 0
        %1298 = vmatpush1.bf16.msra.mxu0 0
        %1299 = vmatprep.subr.bf16.mxu0 0
        %1300 = vmatpush1.bf16.msra.mxu0 0
        %1301 = vmatprep.subr.bf16.mxu0 0
        %1302 = vmatpush1.bf16.msra.mxu0 0
        %1303 = vmatprep.subr.bf16.mxu0 0
        %1304 = vmatpush1.bf16.msra.mxu0 0
        %1305 = vmatprep.mubr.bf16.mxu0 0
        %1306 = vmatmul.mubr.bf16.gmra.mrb[0].mxu0 %v1271
        %v1307 = vpop.f32.mrb[0].mxu0
        %v1308 = vadd.f32 0.0, %v1307
        %v1309 = vpop.f32.mrb[0].mxu0
        %v1310 = vpop.f32.mrb[0].mxu0
        %v1311 = vadd.f32 0.0, %v1310
        %v1312 = vpop.f32.mrb[0].mxu0
        %1313 = vdwg.mxu0
        %1314 = vrot.lane.b32.xlu0 %v1193, 120
        %v1315 = vpop.permute.xlu0 %1314
        %1316 = vrot.lane.b32.xlu0 %v1193, 104
        %v1317 = vpop.permute.xlu0 %1316
        %v1319 = vsel %vm571, %v1315, 0
        %v1322 = vsel %vm571, %v1317, 0
        %1324 = vmatprep.subr.bf16.mxu0 0
        %1325 = vmatpush1.bf16.xpose.msra.mxu0 %v1322
        %1326 = vmatprep.subr.bf16.mxu0 0
        %1327 = vmatpush1.bf16.xpose.msra.mxu0 0
        %1328 = vmatprep.subr.bf16.mxu0 0
        %1329 = vmatpush1.bf16.xpose.msra.mxu0 0
        %1330 = vmatprep.subr.bf16.mxu0 0
        %1331 = vmatpush1.bf16.xpose.msra.mxu0 0
        %1332 = vmatprep.subr.bf16.mxu0 0
        %1333 = vmatpush1.bf16.xpose.msra.mxu0 0
        %1334 = vmatprep.subr.bf16.mxu0 0
        %1335 = vmatpush1.bf16.xpose.msra.mxu0 0
        %1336 = vmatprep.subr.bf16.mxu0 0
        %1337 = vmatpush1.bf16.xpose.msra.mxu0 0
        %1338 = vmatprep.subr.bf16.mxu0 0
        %1339 = vmatpush1.bf16.xpose.msra.mxu0 0
        %1340 = vmatprep.subr.bf16.mxu0 0
        %1341 = vmatpush1.bf16.xpose.msra.mxu0 0
        %1342 = vmatprep.subr.bf16.mxu0 0
        %1343 = vmatpush1.bf16.xpose.msra.mxu0 0
        %1344 = vmatprep.subr.bf16.mxu0 0
        %1345 = vmatpush1.bf16.xpose.msra.mxu0 0
        %1346 = vmatprep.subr.bf16.mxu0 0
        %1347 = vmatpush1.bf16.xpose.msra.mxu0 0
        %1348 = vmatprep.subr.bf16.mxu0 0
        %1349 = vmatpush1.bf16.xpose.msra.mxu0 0
        %1350 = vmatprep.subr.bf16.mxu0 0
        %1351 = vmatpush1.bf16.xpose.msra.mxu0 0
        %1352 = vmatprep.subr.bf16.mxu0 0
        %1353 = vmatpush1.bf16.xpose.msra.mxu0 0
        %1354 = vmatprep.subr.bf16.mxu0 0
        %1355 = vmatpush1.bf16.xpose.msra.mxu0 0
        %1356 = vmatprep.mubr.bf16.mxu0 0
        %1357 = vmatmul.mubr.bf16.gmra.mrb[0].mxu0 %v1319
        %v1358 = vpop.f32.mrb[0].mxu0
        %v1359 = vadd.f32 0.0, %v1358
        %v1360 = vpop.f32.mrb[0].mxu0
        %v1361 = vpop.f32.mrb[0].mxu0
        %v1362 = vadd.f32 0.0, %v1361
        %v1363 = vpop.f32.mrb[0].mxu0
        %1364 = vdwg.mxu0
        %v1365 = vsel %vm619, %v1359, -inf
        %1366 = vmax.xlane.f32.xlu0 %v1365
        %v1367 = vpop.xlane.xlu0 %1366
        %v1368 = vsel %vm619, %v1362, -inf
        %1369 = vmax.xlane.f32.xlu0 %v1368
        %v1370 = vpop.xlane.xlu0 %1369
        %v1371 = vsub.f32 %v1359, %v1367
        %v1372 = vsub.f32 %v1362, %v1370
        %v1373 = vmul.f32 %v1371, 1.442695
        %v1374 = vpow.pop %v1373
        %v1375 = vmul.f32 %v1372, 1.442695
        %v1376 = vpow.pop %v1375
        %v1377 = vsel %vm619, %v1374, 0.0
        %1378 = vadd.xlane.f32.xlu0 %v1377
        %v1379 = vpop.xlane.xlu0 %1378
        %v1380 = vsel %vm619, %v1376, 0.0
        %1381 = vadd.xlane.f32.xlu0 %v1380
        %v1382 = vpop.xlane.xlu0 %1381
        %v1383 = vrcp.pop %v1379
        %v1384 = vrcp.pop %v1382
        %v1385 = vmul.f32 %v1374, %v1383
        %v1386 = vmul.f32 %v1376, %v1384
        %v1387 = vpack.c.bf16 %v1386, %v1385
        %1388 = vrot.lane.b32.xlu0 %v1193, 88
        %v1389 = vpop.permute.xlu0 %1388
        %v1392 = vsel %vm619, %v1387, 0
        %1394 = vmatprep.subr.bf16.mxu0 0
        %1395 = vmatpush1.bf16.msra.mxu0 %v1389
        %1396 = vmatprep.subr.bf16.mxu0 0
        %1397 = vmatpush1.bf16.msra.mxu0 0
        %1398 = vmatprep.subr.bf16.mxu0 0
        %1399 = vmatpush1.bf16.msra.mxu0 0
        %1400 = vmatprep.subr.bf16.mxu0 0
        %1401 = vmatpush1.bf16.msra.mxu0 0
        %1402 = vmatprep.subr.bf16.mxu0 0
        %1403 = vmatpush1.bf16.msra.mxu0 0
        %1404 = vmatprep.subr.bf16.mxu0 0
        %1405 = vmatpush1.bf16.msra.mxu0 0
        %1406 = vmatprep.subr.bf16.mxu0 0
        %1407 = vmatpush1.bf16.msra.mxu0 0
        %1408 = vmatprep.subr.bf16.mxu0 0
        %1409 = vmatpush1.bf16.msra.mxu0 0
        %1410 = vmatprep.subr.bf16.mxu0 0
        %1411 = vmatpush1.bf16.msra.mxu0 0
        %1412 = vmatprep.subr.bf16.mxu0 0
        %1413 = vmatpush1.bf16.msra.mxu0 0
        %1414 = vmatprep.subr.bf16.mxu0 0
        %1415 = vmatpush1.bf16.msra.mxu0 0
        %1416 = vmatprep.subr.bf16.mxu0 0
        %1417 = vmatpush1.bf16.msra.mxu0 0
        %1418 = vmatprep.subr.bf16.mxu0 0
        %1419 = vmatpush1.bf16.msra.mxu0 0
        %1420 = vmatprep.subr.bf16.mxu0 0
        %1421 = vmatpush1.bf16.msra.mxu0 0
        %1422 = vmatprep.subr.bf16.mxu0 0
        %1423 = vmatpush1.bf16.msra.mxu0 0
        %1424 = vmatprep.subr.bf16.mxu0 0
        %1425 = vmatpush1.bf16.msra.mxu0 0
        %1426 = vmatprep.mubr.bf16.mxu0 0
        %1427 = vmatmul.mubr.bf16.gmra.mrb[0].mxu0 %v1392
        %v1428 = vpop.f32.mrb[0].mxu0
        %v1429 = vadd.f32 0.0, %v1428
        %v1430 = vpop.f32.mrb[0].mxu0
        %v1431 = vpop.f32.mrb[0].mxu0
        %v1432 = vadd.f32 0.0, %v1431
        %v1433 = vpop.f32.mrb[0].mxu0
        %1434 = vdwg.mxu0
        %1437 = vrot.lane.b32.xlu0 %v1429, 8
        %v1438 = vpop.permute.xlu0 %1437
        %1439 = vrot.lane.b32.xlu0 %v1432, 8
        %v1440 = vpop.permute.xlu0 %1439
        %v1443 = vsel %vm571, %v1308, %v1438
        %v1444 = vsel %vm571, %v1311, %v1440
        %v1445 = vpack.c.bf16 %v1444, %v1443
        %s1446 = scalar_lea.vmem [#allocation4], 8
        %v1447 = vld [vmem:[%s1446] sm:$0xf]
        %v1448 = vld [vmem:[%s1446 + $0x4] sm:$0xf]
        %v1451 = vunpack.c.l.b16 %v1447
        %v1452 = vunpack.c.l.b16 %v1448
        %v1453 = vpack.c.b16 %v1452, %v1451
        %v1456 = vsel %vm619, %v1445, 0
        %1458 = vmatprep.subr.bf16.mxu0 0
        %1459 = vmatpush1.bf16.msra.mxu0 %v1453
        %1460 = vmatprep.subr.bf16.mxu0 0
        %1461 = vmatpush1.bf16.msra.mxu0 0
        %1462 = vmatprep.subr.bf16.mxu0 0
        %1463 = vmatpush1.bf16.msra.mxu0 0
        %1464 = vmatprep.subr.bf16.mxu0 0
        %1465 = vmatpush1.bf16.msra.mxu0 0
        %1466 = vmatprep.subr.bf16.mxu0 0
        %1467 = vmatpush1.bf16.msra.mxu0 0
        %1468 = vmatprep.subr.bf16.mxu0 0
        %1469 = vmatpush1.bf16.msra.mxu0 0
        %1470 = vmatprep.subr.bf16.mxu0 0
        %1471 = vmatpush1.bf16.msra.mxu0 0
        %1472 = vmatprep.subr.bf16.mxu0 0
        %1473 = vmatpush1.bf16.msra.mxu0 0
        %1474 = vmatprep.subr.bf16.mxu0 0
        %1475 = vmatpush1.bf16.msra.mxu0 0
        %1476 = vmatprep.subr.bf16.mxu0 0
        %1477 = vmatpush1.bf16.msra.mxu0 0
        %1478 = vmatprep.subr.bf16.mxu0 0
        %1479 = vmatpush1.bf16.msra.mxu0 0
        %1480 = vmatprep.subr.bf16.mxu0 0
        %1481 = vmatpush1.bf16.msra.mxu0 0
        %1482 = vmatprep.subr.bf16.mxu0 0
        %1483 = vmatpush1.bf16.msra.mxu0 0
        %1484 = vmatprep.subr.bf16.mxu0 0
        %1485 = vmatpush1.bf16.msra.mxu0 0
        %1486 = vmatprep.subr.bf16.mxu0 0
        %1487 = vmatpush1.bf16.msra.mxu0 0
        %1488 = vmatprep.subr.bf16.mxu0 0
        %1489 = vmatpush1.bf16.msra.mxu0 0
        %1490 = vmatprep.mubr.bf16.mxu0 0
        %1491 = vmatmul.mubr.bf16.gmra.mrb[0].mxu0 %v1456
        %v1492 = vpop.f32.mrb[0].mxu0
        %v1493 = vadd.f32 0.0, %v1492
        %v1494 = vpop.f32.mrb[0].mxu0
        %v1495 = vpop.f32.mrb[0].mxu0
        %v1496 = vadd.f32 0.0, %v1495
        %v1497 = vpop.f32.mrb[0].mxu0
        %1498 = vdwg.mxu0
        %v1499 = vadd.f32 %v1089, %v1493
        %v1500 = vadd.f32 %v1090, %v1496
        %s1501 = scalar_lea.vmem [#allocation2], 6
        %v1502 = vld [vmem:[%s1501] sm:$0x3]
        %v1503 = vsel %vm466, %v1499, 0.0
        %1504 = vadd.xlane.f32.xlu0 %v1503
        %v1505 = vpop.xlane.xlu0 %1504
        %v1506 = vsel %vm466, %v1500, 0.0
        %1507 = vadd.xlane.f32.xlu0 %v1506
        %v1508 = vpop.xlane.xlu0 %1507
        %v1509 = vmul.f32 %v1505, %v473
        %v1510 = vmul.f32 %v1508, %v473
        %v1511 = vsub.f32 %v1499, %v1509
        %v1512 = vsub.f32 %v1500, %v1510
        %v1513 = vmul.f32 %v1511, %v1511
        %v1514 = vmul.f32 %v1512, %v1512
        %v1515 = vsel %vm466, %v1513, 0.0
        %1516 = vadd.xlane.f32.xlu0 %v1515
        %v1517 = vpop.xlane.xlu0 %1516
        %v1518 = vsel %vm466, %v1514, 0.0
        %1519 = vadd.xlane.f32.xlu0 %v1518
        %v1520 = vpop.xlane.xlu0 %1519
        %v1521 = vmul.f32 %v1517, %v473
        %v1522 = vmul.f32 %v1520, %v473
        %v1523 = vadd.f32 %v1521, 1e-05
        %v1524 = vadd.f32 %v1522, 1e-05
        %v1525 = vrsqrt.pop %v1523
        %v1526 = vrsqrt.pop %v1524
        %v1527 = vmul.f32 %v1511, %v1525
        %v1528 = vmul.f32 %v1512, %v1526
        %v1529 = vlaneseq
        %v1530 = vshrl.u32 %v1529, 7
        %v1531 = vsub.s32 0, %v1530
        %v1532 = vrot.slane %v1502, %v1531
        %v1533 = vmul.f32 %v1527, %v1532
        %v1534 = vmul.f32 %v1528, %v1532
        %v1535 = vlaneseq
        %v1536 = vshrl.u32 %v1535, 7
        %v1537 = vsub.s32 1, %v1536
        %v1538 = vrot.slane %v1502, %v1537
        %v1539 = vadd.f32 %v1533, %v1538
        %v1540 = vadd.f32 %v1534, %v1538
        %v1541 = vpack.c.bf16 %v1540, %v1539
        %s1542 = scalar_lea.vmem %s5, 16
        %v1543 = vld [vmem:[%s1542] sm:$0xf]
        %v1544 = vld [vmem:[%s1542 + $0x4] sm:$0xf]
        %v1545 = vld [vmem:[%s1542 + $0x8] sm:$0xf]
        %v1546 = vld [vmem:[%s1542 + $0xc] sm:$0xf]
        %s1547 = scalar_lea.vmem [#allocation6], 1
        %v1548 = vld [vmem:[%s1547] sm:$0x1]
        %v1550 = vlaneseq
        %v1551 = vshrl.u32 %v1550, 7
        %v1552 = vsub.s32 0, %v1551
        %v1553 = vrot.slane %v1548, %v1552
        %v1559 = vunpack.c.l.b16 %v1543
        %v1560 = vunpack.c.l.b16 %v1544
        %v1561 = vunpack.c.l.b16 %v1545
        %v1562 = vunpack.c.l.b16 %v1546
        %v1563 = vpack.c.b16 %v1560, %v1559
        %v1564 = vpack.c.b16 %v1562, %v1561
        %v1568 = vsel %vm466, %v1541, 0
        %1570 = vmatprep.subr.bf16.mxu0 0
        %1571 = vmatpush1.bf16.msra.mxu0 %v1563
        %1572 = vmatprep.subr.bf16.mxu0 0
        %1573 = vmatpush1.bf16.msra.mxu0 %v1564
        %1574 = vmatprep.subr.bf16.mxu0 0
        %1575 = vmatpush1.bf16.msra.mxu0 0
        %1576 = vmatprep.subr.bf16.mxu0 0
        %1577 = vmatpush1.bf16.msra.mxu0 0
        %1578 = vmatprep.subr.bf16.mxu0 0
        %1579 = vmatpush1.bf16.msra.mxu0 0
        %1580 = vmatprep.subr.bf16.mxu0 0
        %1581 = vmatpush1.bf16.msra.mxu0 0
        %1582 = vmatprep.subr.bf16.mxu0 0
        %1583 = vmatpush1.bf16.msra.mxu0 0
        %1584 = vmatprep.subr.bf16.mxu0 0
        %1585 = vmatpush1.bf16.msra.mxu0 0
        %1586 = vmatprep.subr.bf16.mxu0 0
        %1587 = vmatpush1.bf16.msra.mxu0 0
        %1588 = vmatprep.subr.bf16.mxu0 0
        %1589 = vmatpush1.bf16.msra.mxu0 0
        %1590 = vmatprep.subr.bf16.mxu0 0
        %1591 = vmatpush1.bf16.msra.mxu0 0
        %1592 = vmatprep.subr.bf16.mxu0 0
        %1593 = vmatpush1.bf16.msra.mxu0 0
        %1594 = vmatprep.subr.bf16.mxu0 0
        %1595 = vmatpush1.bf16.msra.mxu0 0
        %1596 = vmatprep.subr.bf16.mxu0 0
        %1597 = vmatpush1.bf16.msra.mxu0 0
        %1598 = vmatprep.subr.bf16.mxu0 0
        %1599 = vmatpush1.bf16.msra.mxu0 0
        %1600 = vmatprep.subr.bf16.mxu0 0
        %1601 = vmatpush1.bf16.msra.mxu0 0
        %1602 = vmatprep.mubr.bf16.mxu0 0
        %1603 = vmatmul.mubr.bf16.gmra.mrb[0].mxu0 %v1568
        %v1604 = vpop.f32.mrb[0].mxu0
        %v1605 = vadd.f32 %v1553, %v1604
        %v1606 = vpop.f32.mrb[0].mxu0
        %v1607 = vpop.f32.mrb[0].mxu0
        %v1608 = vadd.f32 %v1553, %v1607
        %v1609 = vpop.f32.mrb[0].mxu0
        %1610 = vdwg.mxu0
        %v1611 = vmul.f32 %v1605, %v1605
        %v1612 = vmul.f32 %v1608, %v1608
        %v1613 = vmul.f32 %v1605, %v1611
        %v1614 = vmul.f32 %v1608, %v1612
        %v1615 = vmul.f32 %v1613, 0.044715
        %v1616 = vmul.f32 %v1614, 0.044715
        %v1617 = vadd.f32 %v1605, %v1615
        %v1618 = vadd.f32 %v1608, %v1616
        %v1619 = vmul.f32 %v1617, 0.7978846
        %v1620 = vmul.f32 %v1618, 0.7978846
        %v1621 = vtanh.pop %v1619
        %v1622 = vtanh.pop %v1620
        %v1623 = vadd.f32 %v1621, 1.0
        %v1624 = vadd.f32 %v1622, 1.0
        %v1625 = vmul.f32 %v1623, 0.5
        %v1626 = vmul.f32 %v1624, 0.5
        %v1627 = vmul.f32 %v1605, %v1625
        %v1628 = vmul.f32 %v1608, %v1626
        %v1629 = vpack.c.bf16 %v1628, %v1627
        %s1630 = scalar_lea.vmem %s6, 32
        %v1631 = vld [vmem:[%s1630] sm:$0xf]
        %v1632 = vld [vmem:[%s1630 + $0x4] sm:$0xf]
        %v1633 = vld [vmem:[%s1630 + $0x8] sm:$0xf]
        %v1634 = vld [vmem:[%s1630 + $0xc] sm:$0xf]
        %v1635 = vld [vmem:[%s1630 + $0x10] sm:$0xf]
        %v1636 = vld [vmem:[%s1630 + $0x14] sm:$0xf]
        %v1637 = vld [vmem:[%s1630 + $0x18] sm:$0xf]
        %v1638 = vld [vmem:[%s1630 + $0x1c] sm:$0xf]
        %v1647 = vunpack.c.l.b16 %v1631
        %v1648 = vunpack.c.l.b16 %v1632
        %v1649 = vunpack.c.l.b16 %v1633
        %v1650 = vunpack.c.l.b16 %v1634
        %v1651 = vunpack.c.l.b16 %v1635
        %v1652 = vunpack.c.l.b16 %v1636
        %v1653 = vunpack.c.l.b16 %v1637
        %v1654 = vunpack.c.l.b16 %v1638
        %v1655 = vpack.c.b16 %v1648, %v1647
        %v1656 = vpack.c.b16 %v1650, %v1649
        %v1657 = vpack.c.b16 %v1652, %v1651
        %v1658 = vpack.c.b16 %v1654, %v1653
        %v1664 = vsel %vm1035, %v1629, 0
        %1666 = vmatprep.subr.bf16.mxu0 0
        %1667 = vmatpush1.bf16.msra.mxu0 %v1655
        %1668 = vmatprep.subr.bf16.mxu0 0
        %1669 = vmatpush1.bf16.msra.mxu0 %v1656
        %1670 = vmatprep.subr.bf16.mxu0 0
        %1671 = vmatpush1.bf16.msra.mxu0 %v1657
        %1672 = vmatprep.subr.bf16.mxu0 0
        %1673 = vmatpush1.bf16.msra.mxu0 %v1658
        %1674 = vmatprep.subr.bf16.mxu0 0
        %1675 = vmatpush1.bf16.msra.mxu0 0
        %1676 = vmatprep.subr.bf16.mxu0 0
        %1677 = vmatpush1.bf16.msra.mxu0 0
        %1678 = vmatprep.subr.bf16.mxu0 0
        %1679 = vmatpush1.bf16.msra.mxu0 0
        %1680 = vmatprep.subr.bf16.mxu0 0
        %1681 = vmatpush1.bf16.msra.mxu0 0
        %1682 = vmatprep.subr.bf16.mxu0 0
        %1683 = vmatpush1.bf16.msra.mxu0 0
        %1684 = vmatprep.subr.bf16.mxu0 0
        %1685 = vmatpush1.bf16.msra.mxu0 0
        %1686 = vmatprep.subr.bf16.mxu0 0
        %1687 = vmatpush1.bf16.msra.mxu0 0
        %1688 = vmatprep.subr.bf16.mxu0 0
        %1689 = vmatpush1.bf16.msra.mxu0 0
        %1690 = vmatprep.subr.bf16.mxu0 0
        %1691 = vmatpush1.bf16.msra.mxu0 0
        %1692 = vmatprep.subr.bf16.mxu0 0
        %1693 = vmatpush1.bf16.msra.mxu0 0
        %1694 = vmatprep.subr.bf16.mxu0 0
        %1695 = vmatpush1.bf16.msra.mxu0 0
        %1696 = vmatprep.subr.bf16.mxu0 0
        %1697 = vmatpush1.bf16.msra.mxu0 0
        %1698 = vmatprep.mubr.bf16.mxu0 0
        %1699 = vmatmul.mubr.bf16.gmra.mrb[0].mxu0 %v1664
        %v1700 = vpop.f32.mrb[0].mxu0
        %v1701 = vadd.f32 0.0, %v1700
        %v1702 = vpop.f32.mrb[0].mxu0
        %v1703 = vpop.f32.mrb[0].mxu0
        %v1704 = vadd.f32 0.0, %v1703
        %v1705 = vpop.f32.mrb[0].mxu0
        %1706 = vdwg.mxu0
        %v1707 = vadd.f32 %v1499, %v1701
        %v1708 = vadd.f32 %v1500, %v1704
        %s1709 = scalar_lea.vmem %s8, 1
        %v1710 = vld [vmem:[%s1709] sm:$0x1]
        %v1712 = vlaneseq
        %v1713 = vshrl.u32 %v1712, 7
        %v1714 = vsub.s32 0, %v1713
        %v1715 = vrot.slane %v1710, %v1714
        %v1717 = vadd.f32 %v1707, %v1715
        %v1718 = vadd.f32 %v1708, %v1715
        %s1719 = scalar_lea.vmem [#allocation2], 8
        %v1720 = vld [vmem:[%s1719] sm:$0x3]
        %v1721 = vsel %vm466, %v1717, 0.0
        %1722 = vadd.xlane.f32.xlu0 %v1721
        %v1723 = vpop.xlane.xlu0 %1722
        %v1724 = vsel %vm466, %v1718, 0.0
        %1725 = vadd.xlane.f32.xlu0 %v1724
        %v1726 = vpop.xlane.xlu0 %1725
        %v1727 = vmul.f32 %v1723, %v473
        %v1728 = vmul.f32 %v1726, %v473
        %v1729 = vsub.f32 %v1717, %v1727
        %v1730 = vsub.f32 %v1718, %v1728
        %v1731 = vmul.f32 %v1729, %v1729
        %v1732 = vmul.f32 %v1730, %v1730
        %v1733 = vsel %vm466, %v1731, 0.0
        %1734 = vadd.xlane.f32.xlu0 %v1733
        %v1735 = vpop.xlane.xlu0 %1734
        %v1736 = vsel %vm466, %v1732, 0.0
        %1737 = vadd.xlane.f32.xlu0 %v1736
        %v1738 = vpop.xlane.xlu0 %1737
        %v1739 = vmul.f32 %v1735, %v473
        %v1740 = vmul.f32 %v1738, %v473
        %v1741 = vadd.f32 %v1739, 1e-05
        %v1742 = vadd.f32 %v1740, 1e-05
        %v1743 = vrsqrt.pop %v1741
        %v1744 = vrsqrt.pop %v1742
        %v1745 = vmul.f32 %v1729, %v1743
        %v1746 = vmul.f32 %v1730, %v1744
        %v1747 = vlaneseq
        %v1748 = vshrl.u32 %v1747, 7
        %v1749 = vsub.s32 0, %v1748
        %v1750 = vrot.slane %v1720, %v1749
        %v1751 = vmul.f32 %v1745, %v1750
        %v1752 = vmul.f32 %v1746, %v1750
        %v1753 = vlaneseq
        %v1754 = vshrl.u32 %v1753, 7
        %v1755 = vsub.s32 1, %v1754
        %v1756 = vrot.slane %v1720, %v1755
        %v1757 = vadd.f32 %v1751, %v1756
        %v1758 = vadd.f32 %v1752, %v1756
        %v1759 = vpack.c.bf16 %v1758, %v1757
        %v1760 = vld [vmem:[#allocation7] sm:$0xf]
        %v1761 = vld [vmem:[#allocation7 + $0x4] sm:$0xf]
        %v1762 = vld [vmem:[#allocation7 + $0x8] sm:$0xf]
        %v1763 = vld [vmem:[#allocation7 + $0xc] sm:$0xf]
        %v1764 = vld [vmem:[#allocation9] sm:$0x1]
        %v1766 = vlaneseq
        %v1767 = vshrl.u32 %v1766, 7
        %v1768 = vsub.s32 0, %v1767
        %v1769 = vrot.slane %v1764, %v1768
        %v1775 = vunpack.c.l.b16 %v1760
        %v1776 = vunpack.c.l.b16 %v1761
        %v1777 = vunpack.c.l.b16 %v1762
        %v1778 = vunpack.c.l.b16 %v1763
        %v1779 = vpack.c.b16 %v1776, %v1775
        %v1780 = vpack.c.b16 %v1778, %v1777
        %v1784 = vsel %vm466, %v1759, 0
        %1786 = vmatprep.subr.bf16.mxu0 0
        %1787 = vmatpush1.bf16.msra.mxu0 %v1779
        %1788 = vmatprep.subr.bf16.mxu0 0
        %1789 = vmatpush1.bf16.msra.mxu0 %v1780
        %1790 = vmatprep.subr.bf16.mxu0 0
        %1791 = vmatpush1.bf16.msra.mxu0 0
        %1792 = vmatprep.subr.bf16.mxu0 0
        %1793 = vmatpush1.bf16.msra.mxu0 0
        %1794 = vmatprep.subr.bf16.mxu0 0
        %1795 = vmatpush1.bf16.msra.mxu0 0
        %1796 = vmatprep.subr.bf16.mxu0 0
        %1797 = vmatpush1.bf16.msra.mxu0 0
        %1798 = vmatprep.subr.bf16.mxu0 0
        %1799 = vmatpush1.bf16.msra.mxu0 0
        %1800 = vmatprep.subr.bf16.mxu0 0
        %1801 = vmatpush1.bf16.msra.mxu0 0
        %1802 = vmatprep.subr.bf16.mxu0 0
        %1803 = vmatpush1.bf16.msra.mxu0 0
        %1804 = vmatprep.subr.bf16.mxu0 0
        %1805 = vmatpush1.bf16.msra.mxu0 0
        %1806 = vmatprep.subr.bf16.mxu0 0
        %1807 = vmatpush1.bf16.msra.mxu0 0
        %1808 = vmatprep.subr.bf16.mxu0 0
        %1809 = vmatpush1.bf16.msra.mxu0 0
        %1810 = vmatprep.subr.bf16.mxu0 0
        %1811 = vmatpush1.bf16.msra.mxu0 0
        %1812 = vmatprep.subr.bf16.mxu0 0
        %1813 = vmatpush1.bf16.msra.mxu0 0
        %1814 = vmatprep.subr.bf16.mxu0 0
        %1815 = vmatpush1.bf16.msra.mxu0 0
        %1816 = vmatprep.subr.bf16.mxu0 0
        %1817 = vmatpush1.bf16.msra.mxu0 0
        %1818 = vmatprep.mubr.bf16.mxu0 0
        %1819 = vmatmul.mubr.bf16.gmra.mrb[0].mxu0 %v1784
        %v1820 = vpop.f32.mrb[0].mxu0
        %v1821 = vadd.f32 %v1769, %v1820
        %v1822 = vpop.f32.mrb[0].mxu0
        %v1823 = vpop.f32.mrb[0].mxu0
        %v1824 = vadd.f32 %v1769, %v1823
        %v1825 = vpop.f32.mrb[0].mxu0
        %1826 = vdwg.mxu0
        %v1827 = vtanh.pop %v1821
        %v1828 = vtanh.pop %v1824
        %1829 = vst.msk [vmem:[%s457] sm:$0xff] %vm466, %v1827
        %1830 = vst.msk [vmem:[%s457 + $0x8] sm:$0xff] %vm466, %v1828
        %p1831 = scmp.lt.s32.totalorder %s25, 1
        %s1832 = scalar_select %p1831, %s25, 1
        %s1833 = smul.addr %s1832, 2
        %s1834 = smul.addr %s1833, 8
        %s1835 = scalar_lea.vmem %s11, %s1834
        // Predicated region
        $region85: #{vit_decoder_forward.1} parent=63 // pred_check
          %p1836 = pneg %p279
        $region86: #{vit_decoder_forward.1} parent=63 // pred_check_branch
          %1838 = sbr.rel (%p1836) target = $region88
        $region87: #{vit_decoder_forward.1} parent=63 // pred_region
          _
        $region88: #{vit_decoder_forward.1} parent=63 // pred_fallthru
          _
      $region64: #{vit_decoder_forward.1} parent=5 // pred_fallthru
        _
      %p1839 = scmp.le.s32.totalorder 2, %s20
      // Predicated region
      $region89: #{vit_decoder_forward.1} parent=5 // pred_check
        %p1840 = pneg %p1839
      $region90: #{vit_decoder_forward.1} parent=5 // pred_check_branch
        %1842 = sbr.rel (%p1840) target = $region92
      $region91: #{vit_decoder_forward.1} parent=5 // pred_region
        %s1843 = ssub.s32 %s20, 2
        // Predicated region
        $region93: #{vit_decoder_forward.1} parent=91 // pred_check
          %p1844 = pneg %p285
        $region94: #{vit_decoder_forward.1} parent=91 // pred_check_branch
          %1846 = sbr.rel (%p1844) target = $region96
        $region95: #{vit_decoder_forward.1} parent=91 // pred_region
          %p1847 = scmp.lt.s32.totalorder %s26, 1
          %s1848 = scalar_select %p1847, %s26, 1
          %s1849 = smul.addr %s1848, 2
          %s1850 = smul.addr %s1849, 8
          %s1851 = scalar_lea.vmem %s11, %s1850
        $region96: #{vit_decoder_forward.1} parent=91 // pred_fallthru
          _
      $region92: #{vit_decoder_forward.1} parent=5 // pred_fallthru
        _
    $region6: #{vit_decoder_forward.1} parent=1 // loop_footer
      %s24 = sadd.s32 1, %s20
    $region7: #{vit_decoder_forward.1} parent=1 // loop_footer_branch
      %19 = sbr.rel target = $region3
    $region8: #{vit_decoder_forward.1} parent=1 // loop_exit
      _
    %1852 = vsyncpa [#allocation3], 1
    %s1853 = scalar_lea.sflag [#allocation3], 1
    %1854 = vsyncpa %s1853, 1
    %1855 = vsyncpa [#allocation5], 1
    %1856 = vsyncpa [#allocation8], 1

</llo_original>
